<compile_context>
chip_gen: v7x
topology: tpu7x:2x2x1
jax: 0.10.0
libtpu: 0.0.40
codegen_flags: <defaults>
</compile_context>

<pallas_src>
import jax
import jax.numpy as jnp
from jax.experimental import pallas as pl
from jax.experimental.pallas import tpu as pltpu


def _onehot_gather_kernel(ids_ref, table_ref, out_ref):
    """Gather T = Tg*G token rows with one MXU matmul per grid step.

    ids_ref:   (Tg, G) int32 -- pre-offset ids (token gi of row t lies in [gi*V, (gi+1)*V)).
    table_ref: (G*V, G*D2p)  -- block-diagonal fused [real|imag] table, VMEM resident.
    out_ref:   (Tg, G*D2p)   -- G gathered rows packed per output row (>=128-lane dense).
    """
    tg, g = ids_ref.shape
    gv = table_ref.shape[0]
    ids = ids_ref[...]                                              # (Tg, G)
    lane = jax.lax.broadcasted_iota(jnp.int32, (tg, gv), 1)         # (Tg, GV)
    onehot = jnp.zeros((tg, gv), dtype=table_ref.dtype)
    for gi in range(g):                  # static & tiny; hit columns are disjoint
        onehot = onehot + (lane == ids[:, gi:gi + 1]).astype(table_ref.dtype)
    # 0/1 weights + HIGHEST precision keep the gather bit-exact for f32 tables.
    out = jnp.dot(onehot, table_ref[...],
                  preferred_element_type=jnp.float32,
                  precision=jax.lax.Precision.HIGHEST)
    out_ref[...] = out.astype(out_ref.dtype)


def _row_gather_kernel(ids_ref, table_ref, out_ref):
    del ids_ref                          # only drives the table index_map
    out_ref[...] = table_ref[...]


def _row_gather(flat_ids, packed_table):
    """Large-vocab fallback: scalar-prefetch row gather (one table row per step)."""
    # TODO(synk): replace with a manual double-buffered make_async_copy gather with
    # wider write-back tiles to amortize the ~0.35us per-grid-step overhead.
    (n,) = flat_ids.shape
    v, d2p = packed_table.shape
    table3 = packed_table.reshape(v, 1, d2p)
    out = pl.pallas_call(
        _row_gather_kernel,
        grid_spec=pltpu.PrefetchScalarGridSpec(
            num_scalar_prefetch=1,
            grid=(n,),
            in_specs=[pl.BlockSpec((1, 1, d2p), lambda i, ids: (ids[i], 0, 0))],
            out_specs=pl.BlockSpec((1, 1, d2p), lambda i, ids: (i, 0, 0)),
        ),
        out_shape=jax.ShapeDtypeStruct((n, 1, d2p), packed_table.dtype),
        compiler_params=pltpu.CompilerParams(dimension_semantics=("arbitrary",)),
    )(flat_ids, table3)
    return out.reshape(n, d2p)


def _onehot_gather(flat_ids, packed_table, *, G, vmem_cap, tokens_per_tile):
    """Main path: block-diagonal one-hot MXU gather.  Returns (N, D2p)."""
    (N,) = flat_ids.shape
    V, D2p = packed_table.shape
    dtype = packed_table.dtype
    itemsize = jnp.dtype(dtype).itemsize
    GV, GD2p = G * V, G * D2p

    # Block-diagonal table: one (Tg, GV) x (GV, GD2p) matmul gathers G tokens per
    # output row and writes the packed layout directly (no lane concat/relayout).
    # (bf16-casting this table halves the resident footprint if reduced embedding
    # precision were acceptable; kept f32 here for exact parity with the module.)
    bd_table = jnp.zeros((GV, GD2p), dtype)
    for gi in range(G):
        bd_table = bd_table.at[gi * V:(gi + 1) * V,
                               gi * D2p:(gi + 1) * D2p].set(packed_table)

    # Token tile size: big enough to amortize per-grid-step overhead, capped by the
    # VMEM headroom left after the resident table (one-hot + 2x out + ids per row).
    unit = 8 * G
    tbl_bytes = 2 * GV * GD2p * itemsize            # worst case: double buffered
    bytes_per_row = GV * 4 + 3 * GD2p * itemsize + 512
    tile_budget = max(1 << 20, (vmem_cap - tbl_bytes) // 2)
    Tg_cap = max(8, (tile_budget // bytes_per_row) // 8 * 8)
    Tg = max(8, (min(pl.cdiv(tokens_per_tile, G), Tg_cap) // 8) * 8)
    T = min(Tg * G, pl.cdiv(N, unit) * unit)        # don't over-pad tiny inputs
    Tg = T // G
    N_pad = pl.cdiv(N, T) * T
    num_tiles = N_pad // T
    # Keep >= 2 grid steps when possible so the "parallel" axis feeds both v7x TCs.
    if num_tiles < 2 and Tg >= 16:
        Tg = ((Tg // 2) // 8) * 8
        T = Tg * G
        N_pad = pl.cdiv(N, T) * T
        num_tiles = N_pad // T

    # Ids: pad, pack G consecutive tokens per row, pre-offset by gi*V so the kernel
    # builds the combined block-diagonal one-hot with plain lane compares.
    ids = jnp.pad(flat_ids, (0, N_pad - N))
    ids_packed = (ids.reshape(N_pad // G, G)
                  + jnp.arange(G, dtype=jnp.int32)[None, :] * V)

    # VMEM budget: actual footprint + modest headroom (no inflated floor).
    vmem_limit = int(min(vmem_cap,
                         tbl_bytes
                         + 2 * Tg * 128 * 4              # id tiles (2 buffers)
                         + 2 * Tg * GD2p * itemsize      # output tiles (2 buffers)
                         + Tg * GV * 4 + Tg * GD2p * 4   # one-hot + f32 accumulator
                         + (4 << 20)))                   # compiler scratch headroom

    def build(table_spec):
        return pl.pallas_call(
            _onehot_gather_kernel,
            grid=(num_tiles,),
            in_specs=[pl.BlockSpec((Tg, G), lambda i: (i, 0)), table_spec],
            out_specs=pl.BlockSpec((Tg, GD2p), lambda i: (i, 0)),
            out_shape=jax.ShapeDtypeStruct((N_pad // G, GD2p), dtype),
            compiler_params=pltpu.CompilerParams(
                dimension_semantics=("parallel",),       # shard token tiles over TCs
                vmem_limit_bytes=vmem_limit,
            ),
        )

    try:
        # Constant table index_map -> request single buffering (a second pipeline
        # buffer is pure waste and matters inside v7x's 64 MiB/TC VMEM).
        spec = pl.BlockSpec((GV, GD2p), lambda i: (0, 0),
                            pipeline_mode=pl.Buffered(1))
        packed_out = build(spec)(ids_packed, bd_table)
    except Exception:
        # jax build without pipeline_mode / Buffered(1): fall back to default (2).
        spec = pl.BlockSpec((GV, GD2p), lambda i: (0, 0))
        packed_out = build(spec)(ids_packed, bd_table)

    return packed_out.reshape(N_pad, D2p)[:N]


def complex_embedding(input_ids, real_table, imag_table, *,
                      tokens_per_tile=2048, onehot_vocab_limit=2048,
                      return_planar=False):
    """Equivalent of torch.complex(real[input_ids], imag[input_ids])."""
    B, S = input_ids.shape
    V, D = real_table.shape
    N = B * S
    D2 = 2 * D
    dtype = real_table.dtype
    itemsize = jnp.dtype(dtype).itemsize

    # NOTE: out-of-range ids are clamped (PyTorch nn.Embedding would raise);
    # padding tokens introduced below gather row 0 and are sliced off.
    flat_ids = jnp.clip(input_ids.reshape(N).astype(jnp.int32), 0, V - 1)

    # Fused [real | imag] table, lane-padded so every output row is a multiple of
    # 128 lanes (unmasked vst on all generations); padding is sliced off below.
    packed = jnp.concatenate([real_table, imag_table], axis=-1)      # (V, D2)
    if D2 < 128 and 128 % D2 == 0:
        D2p = D2                                    # packs evenly into 128 lanes
    else:
        D2p = pl.cdiv(D2, 128) * 128
    if D2p != D2:
        packed = jnp.pad(packed, ((0, 0), (0, D2p - D2)))

    # Per-generation VMEM capacity (v5e/v6e: 128 MiB, v7x: 64 MiB per TC).
    try:
        vmem_cap = int(pltpu.get_tpu_info().vmem_capacity_bytes)
    except Exception:
        vmem_cap = 64 * 1024 * 1024                 # conservative v7x figure

    # Lane-packing factor G: pack G consecutive tokens per output row -> 256-lane
    # rows (fills the 256-wide MXU on v6e/v7x).  Shrink G (never below 128-lane
    # rows) if the block-diagonal table would not stay comfortably VMEM resident.
    G = max(1, 256 // D2p)
    min_G = max(1, 128 // D2p) if D2p <= 128 else 1
    table_cap = vmem_cap // 3

    def bd_table_bytes(g):                           # worst case: double buffered
        return 2 * (g * V) * (g * D2p) * itemsize

    while G > min_G and bd_table_bytes(G) > table_cap:
        G //= 2

    use_onehot = V <= onehot_vocab_limit and bd_table_bytes(G) <= table_cap
    if use_onehot:
        out2 = _onehot_gather(flat_ids, packed, G=G, vmem_cap=vmem_cap,
                              tokens_per_tile=tokens_per_tile)
    else:
        # Large vocab: one-hot VPU compares / (Tg, V) intermediates would dominate
        # before the MXU does -> per-row gather path.
        out2 = _row_gather(flat_ids, packed)

    out2 = out2[:, :D2]                              # drop lane padding
    out_r = out2[:, :D].reshape(B, S, D)
    out_i = out2[:, D:].reshape(B, S, D)
    if return_planar:
        # Skip the complex64 interleave (a full-size HBM rewrite done by XLA) when
        # the consumer can take planar real/imag directly.
        return out_r, out_i
    # TODO(synk): complex64 cannot be produced inside a Pallas TPU kernel; the
    # real+imag interleave is left to XLA outside the kernel.
    return jax.lax.complex(out_r, out_i)


if __name__ == "__main__":
    vocab_size = 32
    embed_dim = 32
    batch, seq = 2, 8

    key = jax.random.PRNGKey(0)
    k_real, k_imag, k_ids = jax.random.split(key, 3)

    # Deterministic "parameters" (torch.randn equivalent: standard normal).
    real_table = jax.random.normal(k_real, (vocab_size, embed_dim), jnp.float32)
    imag_table = jax.random.normal(k_imag, (vocab_size, embed_dim), jnp.float32)
    input_ids = jax.random.randint(k_ids, (batch, seq), 0, vocab_size, jnp.int32)

    out = jax.block_until_ready(
        complex_embedding(input_ids, real_table, imag_table))

    # Reference check (plain JAX gather).
    ref = jax.lax.complex(real_table[input_ids], imag_table[input_ids])
    assert out.shape == (batch, seq, embed_dim)
    assert out.dtype == jnp.complex64
    assert jnp.allclose(out, ref)

    print("KERNEL_OK")
</pallas_src>

<mosaic_0001>
module attributes {stable_mosaic.version = 11 : i64} {
  func.func @_onehot_gather_kernel(%arg0: i32, %arg1: memref<8x4xi32, #tpu.memory_space<vmem>>, %arg2: memref<128x256xf32, #tpu.memory_space<vmem>>, %arg3: memref<8x256xf32, #tpu.memory_space<vmem>>) attributes {dimension_semantics = [#tpu.dimension_semantics<parallel>], iteration_bounds = array<i64: 1>, scalar_prefetch = 0 : i64, scratch_operands = 0 : i64, tpu.core_type = #tpu.core_type<tc>, window_params = [{transform_indices = @transform_0, window_bounds = array<i64: 8, 4>}, {pipeline_mode = #tpu.pipeline_mode<synchronous>, transform_indices = @transform_1, window_bounds = array<i64: 128, 256>}, {transform_indices = @transform_2, window_bounds = array<i64: 8, 256>}]} {
    %c0 = arith.constant 0 : index
    %c0_0 = arith.constant 0 : index
    %0 = vector.load %arg1[%c0, %c0_0] : memref<8x4xi32, #tpu.memory_space<vmem>>, vector<8x4xi32>
    %1 = tpu.iota {dimensions = array<i32: 1>} : vector<8x128xi32>
    %cst = arith.constant 0.000000e+00 : f32
    %2 = vector.broadcast %cst : f32 to vector<8x128xf32>
    %3 = vector.extract_strided_slice %0 {offsets = [0, 0], sizes = [8, 1], strides = [1, 1]} : vector<8x4xi32> to vector<8x1xi32>
    %4 = vector.broadcast %3 : vector<8x1xi32> to vector<8x128xi32>
    %5 = arith.cmpi eq, %1, %4 : vector<8x128xi32>
    %6 = arith.extui %5 : vector<8x128xi1> to vector<8x128xi32>
    %7 = arith.sitofp %6 : vector<8x128xi32> to vector<8x128xf32>
    %8 = arith.addf %2, %7 : vector<8x128xf32>
    %9 = vector.extract_strided_slice %0 {offsets = [0, 1], sizes = [8, 1], strides = [1, 1]} : vector<8x4xi32> to vector<8x1xi32>
    %10 = vector.broadcast %9 : vector<8x1xi32> to vector<8x128xi32>
    %11 = arith.cmpi eq, %1, %10 : vector<8x128xi32>
    %12 = arith.extui %11 : vector<8x128xi1> to vector<8x128xi32>
    %13 = arith.sitofp %12 : vector<8x128xi32> to vector<8x128xf32>
    %14 = arith.addf %8, %13 : vector<8x128xf32>
    %15 = vector.extract_strided_slice %0 {offsets = [0, 2], sizes = [8, 1], strides = [1, 1]} : vector<8x4xi32> to vector<8x1xi32>
    %16 = vector.broadcast %15 : vector<8x1xi32> to vector<8x128xi32>
    %17 = arith.cmpi eq, %1, %16 : vector<8x128xi32>
    %18 = arith.extui %17 : vector<8x128xi1> to vector<8x128xi32>
    %19 = arith.sitofp %18 : vector<8x128xi32> to vector<8x128xf32>
    %20 = arith.addf %14, %19 : vector<8x128xf32>
    %21 = vector.extract_strided_slice %0 {offsets = [0, 3], sizes = [8, 1], strides = [1, 1]} : vector<8x4xi32> to vector<8x1xi32>
    %22 = vector.broadcast %21 : vector<8x1xi32> to vector<8x128xi32>
    %23 = arith.cmpi eq, %1, %22 : vector<8x128xi32>
    %24 = arith.extui %23 : vector<8x128xi1> to vector<8x128xi32>
    %25 = arith.sitofp %24 : vector<8x128xi32> to vector<8x128xf32>
    %26 = arith.addf %20, %25 : vector<8x128xf32>
    %c0_1 = arith.constant 0 : index
    %c0_2 = arith.constant 0 : index
    %27 = vector.load %arg2[%c0_1, %c0_2] : memref<128x256xf32, #tpu.memory_space<vmem>>, vector<128x256xf32>
    %cst_3 = arith.constant dense<0.000000e+00> : vector<8x256xf32>
    %28 = tpu.matmul %26, %27, %cst_3 {dimension_numbers = #tpu.dot_dimension_numbers<[1], [0], [0], [1], [0, 0, 1, 1], [], []>, precision = #tpu.contract_precision<fp32>} : vector<8x128xf32>, vector<128x256xf32>, vector<8x256xf32> -> vector<8x256xf32>
    %c0_4 = arith.constant 0 : index
    %c0_5 = arith.constant 0 : index
    %29 = vector.load %arg3[%c0_4, %c0_5] : memref<8x256xf32, #tpu.memory_space<vmem>>, vector<8x256xf32>
    tpu.vector_store %arg3[%c0_4, %c0_5], %28 {strides = array<i32>} : memref<8x256xf32, #tpu.memory_space<vmem>>, vector<8x256xf32>,
    return
  }
  func.func @transform_0(%arg0: i32) -> (i32, i32) {
    %c0_i32 = arith.constant 0 : i32
    %c0_i32_0 = arith.constant 0 : i32
    return %arg0, %c0_i32 : i32, i32
  }
  func.func @transform_1(%arg0: i32) -> (i32, i32) {
    %c0_i32 = arith.constant 0 : i32
    %c0_i32_0 = arith.constant 0 : i32
    %c0_i32_1 = arith.constant 0 : i32
    return %c0_i32, %c0_i32_0 : i32, i32
  }
  func.func @transform_2(%arg0: i32) -> (i32, i32) {
    %c0_i32 = arith.constant 0 : i32
    %c0_i32_0 = arith.constant 0 : i32
    return %arg0, %c0_i32 : i32, i32
  }
}

module attributes {stable_mosaic.version = 11 : i64} {
  func.func @_onehot_gather_kernel(%arg0: i32, %arg1: memref<8x4xi32, #tpu.memory_space<vmem>>, %arg2: memref<128x256xf32, #tpu.memory_space<vmem>>, %arg3: memref<8x256xf32, #tpu.memory_space<vmem>>) attributes {dimension_semantics = [#tpu.dimension_semantics<parallel>], iteration_bounds = array<i64: 1>, scalar_prefetch = 0 : i64, scratch_operands = 0 : i64, tpu.core_type = #tpu.core_type<tc>, window_params = [{transform_indices = @transform_0, window_bounds = array<i64: 8, 4>}, {pipeline_mode = #tpu.pipeline_mode<synchronous>, transform_indices = @transform_1, window_bounds = array<i64: 128, 256>}, {transform_indices = @transform_2, window_bounds = array<i64: 8, 256>}]} {
    %c0 = arith.constant 0 : index
    %c0_0 = arith.constant 0 : index
    %0 = vector.load %arg1[%c0, %c0_0] : memref<8x4xi32, #tpu.memory_space<vmem>>, vector<8x4xi32>
    %1 = tpu.iota {dimensions = array<i32: 1>} : vector<8x128xi32>
    %cst = arith.constant 0.000000e+00 : f32
    %2 = vector.broadcast %cst : f32 to vector<8x128xf32>
    %3 = vector.extract_strided_slice %0 {offsets = [0, 0], sizes = [8, 1], strides = [1, 1]} : vector<8x4xi32> to vector<8x1xi32>
    %4 = vector.broadcast %3 : vector<8x1xi32> to vector<8x128xi32>
    %5 = arith.cmpi eq, %1, %4 : vector<8x128xi32>
    %6 = arith.extui %5 : vector<8x128xi1> to vector<8x128xi32>
    %7 = arith.sitofp %6 : vector<8x128xi32> to vector<8x128xf32>
    %8 = arith.addf %2, %7 : vector<8x128xf32>
    %9 = vector.extract_strided_slice %0 {offsets = [0, 1], sizes = [8, 1], strides = [1, 1]} : vector<8x4xi32> to vector<8x1xi32>
    %10 = vector.broadcast %9 : vector<8x1xi32> to vector<8x128xi32>
    %11 = arith.cmpi eq, %1, %10 : vector<8x128xi32>
    %12 = arith.extui %11 : vector<8x128xi1> to vector<8x128xi32>
    %13 = arith.sitofp %12 : vector<8x128xi32> to vector<8x128xf32>
    %14 = arith.addf %8, %13 : vector<8x128xf32>
    %15 = vector.extract_strided_slice %0 {offsets = [0, 2], sizes = [8, 1], strides = [1, 1]} : vector<8x4xi32> to vector<8x1xi32>
    %16 = vector.broadcast %15 : vector<8x1xi32> to vector<8x128xi32>
    %17 = arith.cmpi eq, %1, %16 : vector<8x128xi32>
    %18 = arith.extui %17 : vector<8x128xi1> to vector<8x128xi32>
    %19 = arith.sitofp %18 : vector<8x128xi32> to vector<8x128xf32>
    %20 = arith.addf %14, %19 : vector<8x128xf32>
    %21 = vector.extract_strided_slice %0 {offsets = [0, 3], sizes = [8, 1], strides = [1, 1]} : vector<8x4xi32> to vector<8x1xi32>
    %22 = vector.broadcast %21 : vector<8x1xi32> to vector<8x128xi32>
    %23 = arith.cmpi eq, %1, %22 : vector<8x128xi32>
    %24 = arith.extui %23 : vector<8x128xi1> to vector<8x128xi32>
    %25 = arith.sitofp %24 : vector<8x128xi32> to vector<8x128xf32>
    %26 = arith.addf %20, %25 : vector<8x128xf32>
    %c0_1 = arith.constant 0 : index
    %c0_2 = arith.constant 0 : index
    %27 = vector.load %arg2[%c0_1, %c0_2] : memref<128x256xf32, #tpu.memory_space<vmem>>, vector<128x256xf32>
    %cst_3 = arith.constant dense<0.000000e+00> : vector<8x256xf32>
    %28 = tpu.matmul %26, %27, %cst_3 {dimension_numbers = #tpu.dot_dimension_numbers<[1], [0], [0], [1], [0, 0, 1, 1], [], []>, precision = #tpu.contract_precision<fp32>} : vector<8x128xf32>, vector<128x256xf32>, vector<8x256xf32> -> vector<8x256xf32>
    %c0_4 = arith.constant 0 : index
    %c0_5 = arith.constant 0 : index
    %29 = vector.load %arg3[%c0_4, %c0_5] : memref<8x256xf32, #tpu.memory_space<vmem>>, vector<8x256xf32>
    tpu.vector_store %arg3[%c0_4, %c0_5], %28 {strides = array<i32>} : memref<8x256xf32, #tpu.memory_space<vmem>>, vector<8x256xf32>,
    return
  }
  func.func @transform_0(%arg0: i32) -> (i32, i32) {
    %c0_i32 = arith.constant 0 : i32
    %c0_i32_0 = arith.constant 0 : i32
    return %arg0, %c0_i32 : i32, i32
  }
  func.func @transform_1(%arg0: i32) -> (i32, i32) {
    %c0_i32 = arith.constant 0 : i32
    %c0_i32_0 = arith.constant 0 : i32
    %c0_i32_1 = arith.constant 0 : i32
    return %c0_i32, %c0_i32_0 : i32, i32
  }
  func.func @transform_2(%arg0: i32) -> (i32, i32) {
    %c0_i32 = arith.constant 0 : i32
    %c0_i32_0 = arith.constant 0 : i32
    return %arg0, %c0_i32 : i32, i32
  }
}

</mosaic_0001>

<llo_original>
// kernel: tpu_custom_call.1
$region0: #{tpu_custom_call.1}
  #allocation0 [shape = 'u32[]', space=smem, size = 0x4, offset = 0x4, fixed_abs, tag = 'smem constant byte address 0x4 - core index']
  #allocation1 [shape = 'u32[144,128]{1,0:T(1,128)}', space=vmem, size = 0x12000, scoped, tag = 'internal scratch']
  %s0 = inlined_call_operand.vmem [shape: s32[8,4], index: 0, kind: input, shape index: {}]
  %s1 = inlined_call_operand.hbm [shape: f32[128,256], index: 1, kind: input, shape index: {}]
  %s2 = inlined_call_operand.hbm [shape: f32[8,256], index: 2, kind: output, shape index: {}]
  %s3 = sld [smem:[#allocation0]]
  $region22: #{tpu_custom_call.1} parent=0
    _
  %s5 = ssub.s32 1, %s3
  %s6 = scalar_select 0, %s5, %s3
  $region1: #{tpu_custom_call.1} parent=0
    #allocation2 [shape = 'u8[131072]{0}', space=vmem, size = 0x20000, scoped, tag = 'input window, operand 1, single buffered']
    #allocation3 [shape = 's32[1]{0}', space=sflag, size = 0x4, scoped, tag = 'scoped memory for tpu_custom_call.1']
    #allocation4 [shape = 's32[1]{0}', space=sflag, size = 0x4, scoped, tag = 'scoped memory for tpu_custom_call.1']
    #allocation5 [shape = 'u8[8192]{0}', space=vmem, size = 0x2000, scoped, tag = 'output window, operand 0, single buffered']
    %7 = vsyncpa [#allocation3], 0
    %8 = vsyncpa [#allocation4], 0
    // Predicated region
    $region2: #{tpu_custom_call.1} parent=1 // pred_check
      _
    $region3: #{tpu_custom_call.1} parent=1 // pred_check_branch
      %10 = sbr.rel (0) target = $region5
    $region4: #{tpu_custom_call.1} parent=1 // pred_region
      _
    $region5: #{tpu_custom_call.1} parent=1 // pred_fallthru
      _
    // Predicated region
    $region6: #{tpu_custom_call.1} parent=1 // pred_check
      _
    $region7: #{tpu_custom_call.1} parent=1 // pred_check_branch
      %12 = sbr.rel (0) target = $region9
    $region8: #{tpu_custom_call.1} parent=1 // pred_region
      %s14 = ssub.s32 4096, 4096
      %15 = vsyncadd [#allocation3], %s14
      %s16 = sshll.u32 [#allocation2], 4
      %s17 = int_to_ptr.vmem [resolvable:$true] %s16
      %22 = dma.hbm_to_vmem [thread:$0]  %s1, 4096, %s17, [#allocation3], 256, 256, 16
    $region9: #{tpu_custom_call.1} parent=1 // pred_fallthru
      _
    // Predicated region
    $region10: #{tpu_custom_call.1} parent=1 // pred_check
      _
    $region11: #{tpu_custom_call.1} parent=1 // pred_check_branch
      %24 = sbr.rel (0) target = $region13
    $region12: #{tpu_custom_call.1} parent=1 // pred_region
      %25 = dma.done [#allocation3], 4096
    $region13: #{tpu_custom_call.1} parent=1 // pred_fallthru
      _
    %v26 = vld [vmem:[%s0] sm:$0xff]
    %v27 = vlaneseq
    %v28 = vand.u32 %v27, 127
    %29 = vset.pattern.permute.xlu0 0
    %30 = vperm.xlu0 %29, %v26
    %v31 = vpop.permute.xlu0 %30
    %vm32 = vcmp.eq.s32.totalorder %v28, %v31
    %v33 = vsel %vm32, 1, 0
    %v34 = vcvt.s32.f32 %v33
    %v35 = vadd.f32 %v34, 0.0
    %36 = vset.pattern.permute.xlu0 1
    %37 = vperm.xlu0 %36, %v26
    %v38 = vpop.permute.xlu0 %37
    %vm39 = vcmp.eq.s32.totalorder %v28, %v38
    %v40 = vsel %vm39, 1, 0
    %v41 = vcvt.s32.f32 %v40
    %v42 = vadd.f32 %v35, %v41
    %43 = vset.pattern.permute.xlu0 2
    %44 = vperm.xlu0 %43, %v26
    %v45 = vpop.permute.xlu0 %44
    %vm46 = vcmp.eq.s32.totalorder %v28, %v45
    %v47 = vsel %vm46, 1, 0
    %v48 = vcvt.s32.f32 %v47
    %v49 = vadd.f32 %v42, %v48
    %50 = vset.pattern.permute.xlu0 3
    %51 = vperm.xlu0 %50, %v26
    %v52 = vpop.permute.xlu0 %51
    %vm53 = vcmp.eq.s32.totalorder %v28, %v52
    %v54 = vsel %vm53, 1, 0
    %v55 = vcvt.s32.f32 %v54
    %v56 = vadd.f32 %v49, %v55
    %v57 = vld [vmem:[#allocation2] sm:$0xff]
    %v58 = vld [vmem:[#allocation2 + $0x8] sm:$0xff]
    %v59 = vld [vmem:[#allocation2 + $0x10] sm:$0xff]
    %v60 = vld [vmem:[#allocation2 + $0x18] sm:$0xff]
    %v61 = vld [vmem:[#allocation2 + $0x20] sm:$0xff]
    %v62 = vld [vmem:[#allocation2 + $0x28] sm:$0xff]
    %v63 = vld [vmem:[#allocation2 + $0x30] sm:$0xff]
    %v64 = vld [vmem:[#allocation2 + $0x38] sm:$0xff]
    %v65 = vld [vmem:[#allocation2 + $0x40] sm:$0xff]
    %v66 = vld [vmem:[#allocation2 + $0x48] sm:$0xff]
    %v67 = vld [vmem:[#allocation2 + $0x50] sm:$0xff]
    %v68 = vld [vmem:[#allocation2 + $0x58] sm:$0xff]
    %v69 = vld [vmem:[#allocation2 + $0x60] sm:$0xff]
    %v70 = vld [vmem:[#allocation2 + $0x68] sm:$0xff]
    %v71 = vld [vmem:[#allocation2 + $0x70] sm:$0xff]
    %v72 = vld [vmem:[#allocation2 + $0x78] sm:$0xff]
    %v73 = vld [vmem:[#allocation2 + $0x80] sm:$0xff]
    %v74 = vld [vmem:[#allocation2 + $0x88] sm:$0xff]
    %v75 = vld [vmem:[#allocation2 + $0x90] sm:$0xff]
    %v76 = vld [vmem:[#allocation2 + $0x98] sm:$0xff]
    %v77 = vld [vmem:[#allocation2 + $0xa0] sm:$0xff]
    %v78 = vld [vmem:[#allocation2 + $0xa8] sm:$0xff]
    %v79 = vld [vmem:[#allocation2 + $0xb0] sm:$0xff]
    %v80 = vld [vmem:[#allocation2 + $0xb8] sm:$0xff]
    %v81 = vld [vmem:[#allocation2 + $0xc0] sm:$0xff]
    %v82 = vld [vmem:[#allocation2 + $0xc8] sm:$0xff]
    %v83 = vld [vmem:[#allocation2 + $0xd0] sm:$0xff]
    %v84 = vld [vmem:[#allocation2 + $0xd8] sm:$0xff]
    %v85 = vld [vmem:[#allocation2 + $0xe0] sm:$0xff]
    %v86 = vld [vmem:[#allocation2 + $0xe8] sm:$0xff]
    %v87 = vld [vmem:[#allocation2 + $0xf0] sm:$0xff]
    %v88 = vld [vmem:[#allocation2 + $0xf8] sm:$0xff]
    %v89 = vand.u32 %v58, 4294901760
    %90 = vmatprep.subr.mxu0 %v89
    %v91 = vand.u32 %v57, 4294901760
    %92 = vmatpush1.msra.mxu0 %v91
    %v93 = vand.u32 %v60, 4294901760
    %94 = vmatprep.subr.mxu0 %v93
    %v95 = vand.u32 %v59, 4294901760
    %96 = vmatpush1.msra.mxu0 %v95
    %v97 = vand.u32 %v62, 4294901760
    %98 = vmatprep.subr.mxu0 %v97
    %v99 = vand.u32 %v61, 4294901760
    %100 = vmatpush1.msra.mxu0 %v99
    %v101 = vand.u32 %v64, 4294901760
    %102 = vmatprep.subr.mxu0 %v101
    %v103 = vand.u32 %v63, 4294901760
    %104 = vmatpush1.msra.mxu0 %v103
    %v105 = vand.u32 %v66, 4294901760
    %106 = vmatprep.subr.mxu0 %v105
    %v107 = vand.u32 %v65, 4294901760
    %108 = vmatpush1.msra.mxu0 %v107
    %v109 = vand.u32 %v68, 4294901760
    %110 = vmatprep.subr.mxu0 %v109
    %v111 = vand.u32 %v67, 4294901760
    %112 = vmatpush1.msra.mxu0 %v111
    %v113 = vand.u32 %v70, 4294901760
    %114 = vmatprep.subr.mxu0 %v113
    %v115 = vand.u32 %v69, 4294901760
    %116 = vmatpush1.msra.mxu0 %v115
    %v117 = vand.u32 %v72, 4294901760
    %118 = vmatprep.subr.mxu0 %v117
    %v119 = vand.u32 %v71, 4294901760
    %120 = vmatpush1.msra.mxu0 %v119
    %v121 = vand.u32 %v74, 4294901760
    %122 = vmatprep.subr.mxu0 %v121
    %v123 = vand.u32 %v73, 4294901760
    %124 = vmatpush1.msra.mxu0 %v123
    %v125 = vand.u32 %v76, 4294901760
    %126 = vmatprep.subr.mxu0 %v125
    %v127 = vand.u32 %v75, 4294901760
    %128 = vmatpush1.msra.mxu0 %v127
    %v129 = vand.u32 %v78, 4294901760
    %130 = vmatprep.subr.mxu0 %v129
    %v131 = vand.u32 %v77, 4294901760
    %132 = vmatpush1.msra.mxu0 %v131
    %v133 = vand.u32 %v80, 4294901760
    %134 = vmatprep.subr.mxu0 %v133
    %v135 = vand.u32 %v79, 4294901760
    %136 = vmatpush1.msra.mxu0 %v135
    %v137 = vand.u32 %v82, 4294901760
    %138 = vmatprep.subr.mxu0 %v137
    %v139 = vand.u32 %v81, 4294901760
    %140 = vmatpush1.msra.mxu0 %v139
    %v141 = vand.u32 %v84, 4294901760
    %142 = vmatprep.subr.mxu0 %v141
    %v143 = vand.u32 %v83, 4294901760
    %144 = vmatpush1.msra.mxu0 %v143
    %v145 = vand.u32 %v86, 4294901760
    %146 = vmatprep.subr.mxu0 %v145
    %v147 = vand.u32 %v85, 4294901760
    %148 = vmatpush1.msra.mxu0 %v147
    %v149 = vand.u32 %v88, 4294901760
    %150 = vmatprep.subr.mxu0 %v149
    %v151 = vand.u32 %v87, 4294901760
    %152 = vmatpush1.msra.mxu0 %v151
    %153 = vmatprep.subr.mxu0 0.0
    %154 = vmatpush1.msra.mxu0 0.0
    %155 = vmatprep.subr.mxu0 0.0
    %156 = vmatpush1.msra.mxu0 0.0
    %157 = vmatprep.subr.mxu0 0.0
    %158 = vmatpush1.msra.mxu0 0.0
    %159 = vmatprep.subr.mxu0 0.0
    %160 = vmatpush1.msra.mxu0 0.0
    %161 = vmatprep.subr.mxu0 0.0
    %162 = vmatpush1.msra.mxu0 0.0
    %163 = vmatprep.subr.mxu0 0.0
    %164 = vmatpush1.msra.mxu0 0.0
    %165 = vmatprep.subr.mxu0 0.0
    %166 = vmatpush1.msra.mxu0 0.0
    %167 = vmatprep.subr.mxu0 0.0
    %168 = vmatpush1.msra.mxu0 0.0
    %169 = vmatprep.subr.mxu0 0.0
    %170 = vmatpush1.msra.mxu0 0.0
    %171 = vmatprep.subr.mxu0 0.0
    %172 = vmatpush1.msra.mxu0 0.0
    %173 = vmatprep.subr.mxu0 0.0
    %174 = vmatpush1.msra.mxu0 0.0
    %175 = vmatprep.subr.mxu0 0.0
    %176 = vmatpush1.msra.mxu0 0.0
    %177 = vmatprep.subr.mxu0 0.0
    %178 = vmatpush1.msra.mxu0 0.0
    %179 = vmatprep.subr.mxu0 0.0
    %180 = vmatpush1.msra.mxu0 0.0
    %181 = vmatprep.subr.mxu0 0.0
    %182 = vmatpush1.msra.mxu0 0.0
    %183 = vmatprep.subr.mxu0 0.0
    %184 = vmatpush1.msra.mxu0 0.0
    %185 = vmatprep.mubr.f32.mxu0 0.0
    %v186 = vand.u32 %v56, 4294901760
    %v187 = vsub.f32 %v56, %v186
    %v188 = vand.u32 %v187, 4294901760
    %v189 = vsub.f32 %v187, %v188
    %v190 = vand.u32 %v189, 4294901760
    %191 = vmatmul.mubr.f32.gmra.mrb[0].mxu0 %v190
    %v192 = vpop.f32.mrb[0].mxu0
    %v193 = vadd.f32 0.0, %v192
    %v194 = vpop.f32.mrb[0].mxu0
    %v195 = vadd.f32 0.0, %v194
    %196 = vdwg.mxu0
    %v197 = vand.u32 %v58, 4294901760
    %v198 = vsub.f32 %v58, %v197
    %v199 = vand.u32 %v198, 4294901760
    %v200 = vsub.f32 %v198, %v199
    %v201 = vand.u32 %v200, 4294901760
    %202 = vmatprep.subr.mxu0 %v201
    %v203 = vand.u32 %v57, 4294901760
    %v204 = vsub.f32 %v57, %v203
    %v205 = vand.u32 %v204, 4294901760
    %v206 = vsub.f32 %v204, %v205
    %v207 = vand.u32 %v206, 4294901760
    %208 = vmatpush1.msra.mxu0 %v207
    %v209 = vand.u32 %v60, 4294901760
    %v210 = vsub.f32 %v60, %v209
    %v211 = vand.u32 %v210, 4294901760
    %v212 = vsub.f32 %v210, %v211
    %v213 = vand.u32 %v212, 4294901760
    %214 = vmatprep.subr.mxu0 %v213
    %v215 = vand.u32 %v59, 4294901760
    %v216 = vsub.f32 %v59, %v215
    %v217 = vand.u32 %v216, 4294901760
    %v218 = vsub.f32 %v216, %v217
    %v219 = vand.u32 %v218, 4294901760
    %220 = vmatpush1.msra.mxu0 %v219
    %v221 = vand.u32 %v62, 4294901760
    %v222 = vsub.f32 %v62, %v221
    %v223 = vand.u32 %v222, 4294901760
    %v224 = vsub.f32 %v222, %v223
    %v225 = vand.u32 %v224, 4294901760
    %226 = vmatprep.subr.mxu0 %v225
    %v227 = vand.u32 %v61, 4294901760
    %v228 = vsub.f32 %v61, %v227
    %v229 = vand.u32 %v228, 4294901760
    %v230 = vsub.f32 %v228, %v229
    %v231 = vand.u32 %v230, 4294901760
    %232 = vmatpush1.msra.mxu0 %v231
    %v233 = vand.u32 %v64, 4294901760
    %v234 = vsub.f32 %v64, %v233
    %v235 = vand.u32 %v234, 4294901760
    %v236 = vsub.f32 %v234, %v235
    %v237 = vand.u32 %v236, 4294901760
    %238 = vmatprep.subr.mxu0 %v237
    %v239 = vand.u32 %v63, 4294901760
    %v240 = vsub.f32 %v63, %v239
    %v241 = vand.u32 %v240, 4294901760
    %v242 = vsub.f32 %v240, %v241
    %v243 = vand.u32 %v242, 4294901760
    %244 = vmatpush1.msra.mxu0 %v243
    %v245 = vand.u32 %v66, 4294901760
    %v246 = vsub.f32 %v66, %v245
    %v247 = vand.u32 %v246, 4294901760
    %v248 = vsub.f32 %v246, %v247
    %v249 = vand.u32 %v248, 4294901760
    %250 = vmatprep.subr.mxu0 %v249
    %v251 = vand.u32 %v65, 4294901760
    %v252 = vsub.f32 %v65, %v251
    %v253 = vand.u32 %v252, 4294901760
    %v254 = vsub.f32 %v252, %v253
    %v255 = vand.u32 %v254, 4294901760
    %256 = vmatpush1.msra.mxu0 %v255
    %v257 = vand.u32 %v68, 4294901760
    %v258 = vsub.f32 %v68, %v257
    %v259 = vand.u32 %v258, 4294901760
    %v260 = vsub.f32 %v258, %v259
    %v261 = vand.u32 %v260, 4294901760
    %262 = vmatprep.subr.mxu0 %v261
    %v263 = vand.u32 %v67, 4294901760
    %v264 = vsub.f32 %v67, %v263
    %v265 = vand.u32 %v264, 4294901760
    %v266 = vsub.f32 %v264, %v265
    %v267 = vand.u32 %v266, 4294901760
    %268 = vmatpush1.msra.mxu0 %v267
    %v269 = vand.u32 %v70, 4294901760
    %v270 = vsub.f32 %v70, %v269
    %v271 = vand.u32 %v270, 4294901760
    %v272 = vsub.f32 %v270, %v271
    %v273 = vand.u32 %v272, 4294901760
    %274 = vmatprep.subr.mxu0 %v273
    %v275 = vand.u32 %v69, 4294901760
    %v276 = vsub.f32 %v69, %v275
    %v277 = vand.u32 %v276, 4294901760
    %v278 = vsub.f32 %v276, %v277
    %v279 = vand.u32 %v278, 4294901760
    %280 = vmatpush1.msra.mxu0 %v279
    %v281 = vand.u32 %v72, 4294901760
    %v282 = vsub.f32 %v72, %v281
    %v283 = vand.u32 %v282, 4294901760
    %v284 = vsub.f32 %v282, %v283
    %v285 = vand.u32 %v284, 4294901760
    %286 = vmatprep.subr.mxu0 %v285
    %v287 = vand.u32 %v71, 4294901760
    %v288 = vsub.f32 %v71, %v287
    %v289 = vand.u32 %v288, 4294901760
    %v290 = vsub.f32 %v288, %v289
    %v291 = vand.u32 %v290, 4294901760
    %292 = vmatpush1.msra.mxu0 %v291
    %v293 = vand.u32 %v74, 4294901760
    %v294 = vsub.f32 %v74, %v293
    %v295 = vand.u32 %v294, 4294901760
    %v296 = vsub.f32 %v294, %v295
    %v297 = vand.u32 %v296, 4294901760
    %298 = vmatprep.subr.mxu0 %v297
    %v299 = vand.u32 %v73, 4294901760
    %v300 = vsub.f32 %v73, %v299
    %v301 = vand.u32 %v300, 4294901760
    %v302 = vsub.f32 %v300, %v301
    %v303 = vand.u32 %v302, 4294901760
    %304 = vmatpush1.msra.mxu0 %v303
    %v305 = vand.u32 %v76, 4294901760
    %v306 = vsub.f32 %v76, %v305
    %v307 = vand.u32 %v306, 4294901760
    %v308 = vsub.f32 %v306, %v307
    %v309 = vand.u32 %v308, 4294901760
    %310 = vmatprep.subr.mxu0 %v309
    %v311 = vand.u32 %v75, 4294901760
    %v312 = vsub.f32 %v75, %v311
    %v313 = vand.u32 %v312, 4294901760
    %v314 = vsub.f32 %v312, %v313
    %v315 = vand.u32 %v314, 4294901760
    %316 = vmatpush1.msra.mxu0 %v315
    %v317 = vand.u32 %v78, 4294901760
    %v318 = vsub.f32 %v78, %v317
    %v319 = vand.u32 %v318, 4294901760
    %v320 = vsub.f32 %v318, %v319
    %v321 = vand.u32 %v320, 4294901760
    %322 = vmatprep.subr.mxu0 %v321
    %v323 = vand.u32 %v77, 4294901760
    %v324 = vsub.f32 %v77, %v323
    %v325 = vand.u32 %v324, 4294901760
    %v326 = vsub.f32 %v324, %v325
    %v327 = vand.u32 %v326, 4294901760
    %328 = vmatpush1.msra.mxu0 %v327
    %v329 = vand.u32 %v80, 4294901760
    %v330 = vsub.f32 %v80, %v329
    %v331 = vand.u32 %v330, 4294901760
    %v332 = vsub.f32 %v330, %v331
    %v333 = vand.u32 %v332, 4294901760
    %334 = vmatprep.subr.mxu0 %v333
    %v335 = vand.u32 %v79, 4294901760
    %v336 = vsub.f32 %v79, %v335
    %v337 = vand.u32 %v336, 4294901760
    %v338 = vsub.f32 %v336, %v337
    %v339 = vand.u32 %v338, 4294901760
    %340 = vmatpush1.msra.mxu0 %v339
    %v341 = vand.u32 %v82, 4294901760
    %v342 = vsub.f32 %v82, %v341
    %v343 = vand.u32 %v342, 4294901760
    %v344 = vsub.f32 %v342, %v343
    %v345 = vand.u32 %v344, 4294901760
    %346 = vmatprep.subr.mxu0 %v345
    %v347 = vand.u32 %v81, 4294901760
    %v348 = vsub.f32 %v81, %v347
    %v349 = vand.u32 %v348, 4294901760
    %v350 = vsub.f32 %v348, %v349
    %v351 = vand.u32 %v350, 4294901760
    %352 = vmatpush1.msra.mxu0 %v351
    %v353 = vand.u32 %v84, 4294901760
    %v354 = vsub.f32 %v84, %v353
    %v355 = vand.u32 %v354, 4294901760
    %v356 = vsub.f32 %v354, %v355
    %v357 = vand.u32 %v356, 4294901760
    %358 = vmatprep.subr.mxu0 %v357
    %v359 = vand.u32 %v83, 4294901760
    %v360 = vsub.f32 %v83, %v359
    %v361 = vand.u32 %v360, 4294901760
    %v362 = vsub.f32 %v360, %v361
    %v363 = vand.u32 %v362, 4294901760
    %364 = vmatpush1.msra.mxu0 %v363
    %v365 = vand.u32 %v86, 4294901760
    %v366 = vsub.f32 %v86, %v365
    %v367 = vand.u32 %v366, 4294901760
    %v368 = vsub.f32 %v366, %v367
    %v369 = vand.u32 %v368, 4294901760
    %370 = vmatprep.subr.mxu0 %v369
    %v371 = vand.u32 %v85, 4294901760
    %v372 = vsub.f32 %v85, %v371
    %v373 = vand.u32 %v372, 4294901760
    %v374 = vsub.f32 %v372, %v373
    %v375 = vand.u32 %v374, 4294901760
    %376 = vmatpush1.msra.mxu0 %v375
    %v377 = vand.u32 %v88, 4294901760
    %v378 = vsub.f32 %v88, %v377
    %v379 = vand.u32 %v378, 4294901760
    %v380 = vsub.f32 %v378, %v379
    %v381 = vand.u32 %v380, 4294901760
    %382 = vmatprep.subr.mxu0 %v381
    %v383 = vand.u32 %v87, 4294901760
    %v384 = vsub.f32 %v87, %v383
    %v385 = vand.u32 %v384, 4294901760
    %v386 = vsub.f32 %v384, %v385
    %v387 = vand.u32 %v386, 4294901760
    %388 = vmatpush1.msra.mxu0 %v387
    %389 = vmatprep.subr.mxu0 0.0
    %390 = vmatpush1.msra.mxu0 0.0
    %391 = vmatprep.subr.mxu0 0.0
    %392 = vmatpush1.msra.mxu0 0.0
    %393 = vmatprep.subr.mxu0 0.0
    %394 = vmatpush1.msra.mxu0 0.0
    %395 = vmatprep.subr.mxu0 0.0
    %396 = vmatpush1.msra.mxu0 0.0
    %397 = vmatprep.subr.mxu0 0.0
    %398 = vmatpush1.msra.mxu0 0.0
    %399 = vmatprep.subr.mxu0 0.0
    %400 = vmatpush1.msra.mxu0 0.0
    %401 = vmatprep.subr.mxu0 0.0
    %402 = vmatpush1.msra.mxu0 0.0
    %403 = vmatprep.subr.mxu0 0.0
    %404 = vmatpush1.msra.mxu0 0.0
    %405 = vmatprep.subr.mxu0 0.0
    %406 = vmatpush1.msra.mxu0 0.0
    %407 = vmatprep.subr.mxu0 0.0
    %408 = vmatpush1.msra.mxu0 0.0
    %409 = vmatprep.subr.mxu0 0.0
    %410 = vmatpush1.msra.mxu0 0.0
    %411 = vmatprep.subr.mxu0 0.0
    %412 = vmatpush1.msra.mxu0 0.0
    %413 = vmatprep.subr.mxu0 0.0
    %414 = vmatpush1.msra.mxu0 0.0
    %415 = vmatprep.subr.mxu0 0.0
    %416 = vmatpush1.msra.mxu0 0.0
    %417 = vmatprep.subr.mxu0 0.0
    %418 = vmatpush1.msra.mxu0 0.0
    %419 = vmatprep.subr.mxu0 0.0
    %420 = vmatpush1.msra.mxu0 0.0
    %421 = vmatprep.mubr.f32.mxu0 0.0
    %v422 = vand.u32 %v56, 4294901760
    %423 = vmatmul.mubr.f32.gmra.mrb[0].mxu0 %v422
    %v424 = vpop.f32.mrb[0].mxu0
    %v425 = vadd.f32 %v193, %v424
    %v426 = vpop.f32.mrb[0].mxu0
    %v427 = vadd.f32 %v195, %v426
    %428 = vdwg.mxu0
    %v429 = vand.u32 %v58, 4294901760
    %v430 = vsub.f32 %v58, %v429
    %431 = vmatprep.subr.mxu0 %v430
    %v432 = vand.u32 %v57, 4294901760
    %v433 = vsub.f32 %v57, %v432
    %434 = vmatpush1.msra.mxu0 %v433
    %v435 = vand.u32 %v60, 4294901760
    %v436 = vsub.f32 %v60, %v435
    %437 = vmatprep.subr.mxu0 %v436
    %v438 = vand.u32 %v59, 4294901760
    %v439 = vsub.f32 %v59, %v438
    %440 = vmatpush1.msra.mxu0 %v439
    %v441 = vand.u32 %v62, 4294901760
    %v442 = vsub.f32 %v62, %v441
    %443 = vmatprep.subr.mxu0 %v442
    %v444 = vand.u32 %v61, 4294901760
    %v445 = vsub.f32 %v61, %v444
    %446 = vmatpush1.msra.mxu0 %v445
    %v447 = vand.u32 %v64, 4294901760
    %v448 = vsub.f32 %v64, %v447
    %449 = vmatprep.subr.mxu0 %v448
    %v450 = vand.u32 %v63, 4294901760
    %v451 = vsub.f32 %v63, %v450
    %452 = vmatpush1.msra.mxu0 %v451
    %v453 = vand.u32 %v66, 4294901760
    %v454 = vsub.f32 %v66, %v453
    %455 = vmatprep.subr.mxu0 %v454
    %v456 = vand.u32 %v65, 4294901760
    %v457 = vsub.f32 %v65, %v456
    %458 = vmatpush1.msra.mxu0 %v457
    %v459 = vand.u32 %v68, 4294901760
    %v460 = vsub.f32 %v68, %v459
    %461 = vmatprep.subr.mxu0 %v460
    %v462 = vand.u32 %v67, 4294901760
    %v463 = vsub.f32 %v67, %v462
    %464 = vmatpush1.msra.mxu0 %v463
    %v465 = vand.u32 %v70, 4294901760
    %v466 = vsub.f32 %v70, %v465
    %467 = vmatprep.subr.mxu0 %v466
    %v468 = vand.u32 %v69, 4294901760
    %v469 = vsub.f32 %v69, %v468
    %470 = vmatpush1.msra.mxu0 %v469
    %v471 = vand.u32 %v72, 4294901760
    %v472 = vsub.f32 %v72, %v471
    %473 = vmatprep.subr.mxu0 %v472
    %v474 = vand.u32 %v71, 4294901760
    %v475 = vsub.f32 %v71, %v474
    %476 = vmatpush1.msra.mxu0 %v475
    %v477 = vand.u32 %v74, 4294901760
    %v478 = vsub.f32 %v74, %v477
    %479 = vmatprep.subr.mxu0 %v478
    %v480 = vand.u32 %v73, 4294901760
    %v481 = vsub.f32 %v73, %v480
    %482 = vmatpush1.msra.mxu0 %v481
    %v483 = vand.u32 %v76, 4294901760
    %v484 = vsub.f32 %v76, %v483
    %485 = vmatprep.subr.mxu0 %v484
    %v486 = vand.u32 %v75, 4294901760
    %v487 = vsub.f32 %v75, %v486
    %488 = vmatpush1.msra.mxu0 %v487
    %v489 = vand.u32 %v78, 4294901760
    %v490 = vsub.f32 %v78, %v489
    %491 = vmatprep.subr.mxu0 %v490
    %v492 = vand.u32 %v77, 4294901760
    %v493 = vsub.f32 %v77, %v492
    %494 = vmatpush1.msra.mxu0 %v493
    %v495 = vand.u32 %v80, 4294901760
    %v496 = vsub.f32 %v80, %v495
    %497 = vmatprep.subr.mxu0 %v496
    %v498 = vand.u32 %v79, 4294901760
    %v499 = vsub.f32 %v79, %v498
    %500 = vmatpush1.msra.mxu0 %v499
    %v501 = vand.u32 %v82, 4294901760
    %v502 = vsub.f32 %v82, %v501
    %503 = vmatprep.subr.mxu0 %v502
    %v504 = vand.u32 %v81, 4294901760
    %v505 = vsub.f32 %v81, %v504
    %506 = vmatpush1.msra.mxu0 %v505
    %v507 = vand.u32 %v84, 4294901760
    %v508 = vsub.f32 %v84, %v507
    %509 = vmatprep.subr.mxu0 %v508
    %v510 = vand.u32 %v83, 4294901760
    %v511 = vsub.f32 %v83, %v510
    %512 = vmatpush1.msra.mxu0 %v511
    %v513 = vand.u32 %v86, 4294901760
    %v514 = vsub.f32 %v86, %v513
    %515 = vmatprep.subr.mxu0 %v514
    %v516 = vand.u32 %v85, 4294901760
    %v517 = vsub.f32 %v85, %v516
    %518 = vmatpush1.msra.mxu0 %v517
    %v519 = vand.u32 %v88, 4294901760
    %v520 = vsub.f32 %v88, %v519
    %521 = vmatprep.subr.mxu0 %v520
    %v522 = vand.u32 %v87, 4294901760
    %v523 = vsub.f32 %v87, %v522
    %524 = vmatpush1.msra.mxu0 %v523
    %525 = vmatprep.subr.mxu0 0.0
    %526 = vmatpush1.msra.mxu0 0.0
    %527 = vmatprep.subr.mxu0 0.0
    %528 = vmatpush1.msra.mxu0 0.0
    %529 = vmatprep.subr.mxu0 0.0
    %530 = vmatpush1.msra.mxu0 0.0
    %531 = vmatprep.subr.mxu0 0.0
    %532 = vmatpush1.msra.mxu0 0.0
    %533 = vmatprep.subr.mxu0 0.0
    %534 = vmatpush1.msra.mxu0 0.0
    %535 = vmatprep.subr.mxu0 0.0
    %536 = vmatpush1.msra.mxu0 0.0
    %537 = vmatprep.subr.mxu0 0.0
    %538 = vmatpush1.msra.mxu0 0.0
    %539 = vmatprep.subr.mxu0 0.0
    %540 = vmatpush1.msra.mxu0 0.0
    %541 = vmatprep.subr.mxu0 0.0
    %542 = vmatpush1.msra.mxu0 0.0
    %543 = vmatprep.subr.mxu0 0.0
    %544 = vmatpush1.msra.mxu0 0.0
    %545 = vmatprep.subr.mxu0 0.0
    %546 = vmatpush1.msra.mxu0 0.0
    %547 = vmatprep.subr.mxu0 0.0
    %548 = vmatpush1.msra.mxu0 0.0
    %549 = vmatprep.subr.mxu0 0.0
    %550 = vmatpush1.msra.mxu0 0.0
    %551 = vmatprep.subr.mxu0 0.0
    %552 = vmatpush1.msra.mxu0 0.0
    %553 = vmatprep.subr.mxu0 0.0
    %554 = vmatpush1.msra.mxu0 0.0
    %555 = vmatprep.subr.mxu0 0.0
    %556 = vmatpush1.msra.mxu0 0.0
    %557 = vmatprep.mubr.f32.mxu0 0.0
    %v558 = vand.u32 %v56, 4294901760
    %v559 = vsub.f32 %v56, %v558
    %560 = vmatmul.mubr.f32.gmra.mrb[0].mxu0 %v559
    %v561 = vpop.f32.mrb[0].mxu0
    %v562 = vadd.f32 %v425, %v561
    %v563 = vpop.f32.mrb[0].mxu0
    %v564 = vadd.f32 %v427, %v563
    %565 = vdwg.mxu0
    %v566 = vand.u32 %v58, 4294901760
    %567 = vmatprep.subr.mxu0 %v566
    %v568 = vand.u32 %v57, 4294901760
    %569 = vmatpush1.msra.mxu0 %v568
    %v570 = vand.u32 %v60, 4294901760
    %571 = vmatprep.subr.mxu0 %v570
    %v572 = vand.u32 %v59, 4294901760
    %573 = vmatpush1.msra.mxu0 %v572
    %v574 = vand.u32 %v62, 4294901760
    %575 = vmatprep.subr.mxu0 %v574
    %v576 = vand.u32 %v61, 4294901760
    %577 = vmatpush1.msra.mxu0 %v576
    %v578 = vand.u32 %v64, 4294901760
    %579 = vmatprep.subr.mxu0 %v578
    %v580 = vand.u32 %v63, 4294901760
    %581 = vmatpush1.msra.mxu0 %v580
    %v582 = vand.u32 %v66, 4294901760
    %583 = vmatprep.subr.mxu0 %v582
    %v584 = vand.u32 %v65, 4294901760
    %585 = vmatpush1.msra.mxu0 %v584
    %v586 = vand.u32 %v68, 4294901760
    %587 = vmatprep.subr.mxu0 %v586
    %v588 = vand.u32 %v67, 4294901760
    %589 = vmatpush1.msra.mxu0 %v588
    %v590 = vand.u32 %v70, 4294901760
    %591 = vmatprep.subr.mxu0 %v590
    %v592 = vand.u32 %v69, 4294901760
    %593 = vmatpush1.msra.mxu0 %v592
    %v594 = vand.u32 %v72, 4294901760
    %595 = vmatprep.subr.mxu0 %v594
    %v596 = vand.u32 %v71, 4294901760
    %597 = vmatpush1.msra.mxu0 %v596
    %v598 = vand.u32 %v74, 4294901760
    %599 = vmatprep.subr.mxu0 %v598
    %v600 = vand.u32 %v73, 4294901760
    %601 = vmatpush1.msra.mxu0 %v600
    %v602 = vand.u32 %v76, 4294901760
    %603 = vmatprep.subr.mxu0 %v602
    %v604 = vand.u32 %v75, 4294901760
    %605 = vmatpush1.msra.mxu0 %v604
    %v606 = vand.u32 %v78, 4294901760
    %607 = vmatprep.subr.mxu0 %v606
    %v608 = vand.u32 %v77, 4294901760
    %609 = vmatpush1.msra.mxu0 %v608
    %v610 = vand.u32 %v80, 4294901760
    %611 = vmatprep.subr.mxu0 %v610
    %v612 = vand.u32 %v79, 4294901760
    %613 = vmatpush1.msra.mxu0 %v612
    %v614 = vand.u32 %v82, 4294901760
    %615 = vmatprep.subr.mxu0 %v614
    %v616 = vand.u32 %v81, 4294901760
    %617 = vmatpush1.msra.mxu0 %v616
    %v618 = vand.u32 %v84, 4294901760
    %619 = vmatprep.subr.mxu0 %v618
    %v620 = vand.u32 %v83, 4294901760
    %621 = vmatpush1.msra.mxu0 %v620
    %v622 = vand.u32 %v86, 4294901760
    %623 = vmatprep.subr.mxu0 %v622
    %v624 = vand.u32 %v85, 4294901760
    %625 = vmatpush1.msra.mxu0 %v624
    %v626 = vand.u32 %v88, 4294901760
    %627 = vmatprep.subr.mxu0 %v626
    %v628 = vand.u32 %v87, 4294901760
    %629 = vmatpush1.msra.mxu0 %v628
    %630 = vmatprep.subr.mxu0 0.0
    %631 = vmatpush1.msra.mxu0 0.0
    %632 = vmatprep.subr.mxu0 0.0
    %633 = vmatpush1.msra.mxu0 0.0
    %634 = vmatprep.subr.mxu0 0.0
    %635 = vmatpush1.msra.mxu0 0.0
    %636 = vmatprep.subr.mxu0 0.0
    %637 = vmatpush1.msra.mxu0 0.0
    %638 = vmatprep.subr.mxu0 0.0
    %639 = vmatpush1.msra.mxu0 0.0
    %640 = vmatprep.subr.mxu0 0.0
    %641 = vmatpush1.msra.mxu0 0.0
    %642 = vmatprep.subr.mxu0 0.0
    %643 = vmatpush1.msra.mxu0 0.0
    %644 = vmatprep.subr.mxu0 0.0
    %645 = vmatpush1.msra.mxu0 0.0
    %646 = vmatprep.subr.mxu0 0.0
    %647 = vmatpush1.msra.mxu0 0.0
    %648 = vmatprep.subr.mxu0 0.0
    %649 = vmatpush1.msra.mxu0 0.0
    %650 = vmatprep.subr.mxu0 0.0
    %651 = vmatpush1.msra.mxu0 0.0
    %652 = vmatprep.subr.mxu0 0.0
    %653 = vmatpush1.msra.mxu0 0.0
    %654 = vmatprep.subr.mxu0 0.0
    %655 = vmatpush1.msra.mxu0 0.0
    %656 = vmatprep.subr.mxu0 0.0
    %657 = vmatpush1.msra.mxu0 0.0
    %658 = vmatprep.subr.mxu0 0.0
    %659 = vmatpush1.msra.mxu0 0.0
    %660 = vmatprep.subr.mxu0 0.0
    %661 = vmatpush1.msra.mxu0 0.0
    %662 = vmatprep.mubr.f32.mxu0 0.0
    %v663 = vand.u32 %v56, 4294901760
    %v664 = vsub.f32 %v56, %v663
    %v665 = vand.u32 %v664, 4294901760
    %666 = vmatmul.mubr.f32.gmra.mrb[0].mxu0 %v665
    %v667 = vpop.f32.mrb[0].mxu0
    %v668 = vadd.f32 %v562, %v667
    %v669 = vpop.f32.mrb[0].mxu0
    %v670 = vadd.f32 %v564, %v669
    %671 = vdwg.mxu0
    %v672 = vand.u32 %v58, 4294901760
    %v673 = vsub.f32 %v58, %v672
    %v674 = vand.u32 %v673, 4294901760
    %675 = vmatprep.subr.mxu0 %v674
    %v676 = vand.u32 %v57, 4294901760
    %v677 = vsub.f32 %v57, %v676
    %v678 = vand.u32 %v677, 4294901760
    %679 = vmatpush1.msra.mxu0 %v678
    %v680 = vand.u32 %v60, 4294901760
    %v681 = vsub.f32 %v60, %v680
    %v682 = vand.u32 %v681, 4294901760
    %683 = vmatprep.subr.mxu0 %v682
    %v684 = vand.u32 %v59, 4294901760
    %v685 = vsub.f32 %v59, %v684
    %v686 = vand.u32 %v685, 4294901760
    %687 = vmatpush1.msra.mxu0 %v686
    %v688 = vand.u32 %v62, 4294901760
    %v689 = vsub.f32 %v62, %v688
    %v690 = vand.u32 %v689, 4294901760
    %691 = vmatprep.subr.mxu0 %v690
    %v692 = vand.u32 %v61, 4294901760
    %v693 = vsub.f32 %v61, %v692
    %v694 = vand.u32 %v693, 4294901760
    %695 = vmatpush1.msra.mxu0 %v694
    %v696 = vand.u32 %v64, 4294901760
    %v697 = vsub.f32 %v64, %v696
    %v698 = vand.u32 %v697, 4294901760
    %699 = vmatprep.subr.mxu0 %v698
    %v700 = vand.u32 %v63, 4294901760
    %v701 = vsub.f32 %v63, %v700
    %v702 = vand.u32 %v701, 4294901760
    %703 = vmatpush1.msra.mxu0 %v702
    %v704 = vand.u32 %v66, 4294901760
    %v705 = vsub.f32 %v66, %v704
    %v706 = vand.u32 %v705, 4294901760
    %707 = vmatprep.subr.mxu0 %v706
    %v708 = vand.u32 %v65, 4294901760
    %v709 = vsub.f32 %v65, %v708
    %v710 = vand.u32 %v709, 4294901760
    %711 = vmatpush1.msra.mxu0 %v710
    %v712 = vand.u32 %v68, 4294901760
    %v713 = vsub.f32 %v68, %v712
    %v714 = vand.u32 %v713, 4294901760
    %715 = vmatprep.subr.mxu0 %v714
    %v716 = vand.u32 %v67, 4294901760
    %v717 = vsub.f32 %v67, %v716
    %v718 = vand.u32 %v717, 4294901760
    %719 = vmatpush1.msra.mxu0 %v718
    %v720 = vand.u32 %v70, 4294901760
    %v721 = vsub.f32 %v70, %v720
    %v722 = vand.u32 %v721, 4294901760
    %723 = vmatprep.subr.mxu0 %v722
    %v724 = vand.u32 %v69, 4294901760
    %v725 = vsub.f32 %v69, %v724
    %v726 = vand.u32 %v725, 4294901760
    %727 = vmatpush1.msra.mxu0 %v726
    %v728 = vand.u32 %v72, 4294901760
    %v729 = vsub.f32 %v72, %v728
    %v730 = vand.u32 %v729, 4294901760
    %731 = vmatprep.subr.mxu0 %v730
    %v732 = vand.u32 %v71, 4294901760
    %v733 = vsub.f32 %v71, %v732
    %v734 = vand.u32 %v733, 4294901760
    %735 = vmatpush1.msra.mxu0 %v734
    %v736 = vand.u32 %v74, 4294901760
    %v737 = vsub.f32 %v74, %v736
    %v738 = vand.u32 %v737, 4294901760
    %739 = vmatprep.subr.mxu0 %v738
    %v740 = vand.u32 %v73, 4294901760
    %v741 = vsub.f32 %v73, %v740
    %v742 = vand.u32 %v741, 4294901760
    %743 = vmatpush1.msra.mxu0 %v742
    %v744 = vand.u32 %v76, 4294901760
    %v745 = vsub.f32 %v76, %v744
    %v746 = vand.u32 %v745, 4294901760
    %747 = vmatprep.subr.mxu0 %v746
    %v748 = vand.u32 %v75, 4294901760
    %v749 = vsub.f32 %v75, %v748
    %v750 = vand.u32 %v749, 4294901760
    %751 = vmatpush1.msra.mxu0 %v750
    %v752 = vand.u32 %v78, 4294901760
    %v753 = vsub.f32 %v78, %v752
    %v754 = vand.u32 %v753, 4294901760
    %755 = vmatprep.subr.mxu0 %v754
    %v756 = vand.u32 %v77, 4294901760
    %v757 = vsub.f32 %v77, %v756
    %v758 = vand.u32 %v757, 4294901760
    %759 = vmatpush1.msra.mxu0 %v758
    %v760 = vand.u32 %v80, 4294901760
    %v761 = vsub.f32 %v80, %v760
    %v762 = vand.u32 %v761, 4294901760
    %763 = vmatprep.subr.mxu0 %v762
    %v764 = vand.u32 %v79, 4294901760
    %v765 = vsub.f32 %v79, %v764
    %v766 = vand.u32 %v765, 4294901760
    %767 = vmatpush1.msra.mxu0 %v766
    %v768 = vand.u32 %v82, 4294901760
    %v769 = vsub.f32 %v82, %v768
    %v770 = vand.u32 %v769, 4294901760
    %771 = vmatprep.subr.mxu0 %v770
    %v772 = vand.u32 %v81, 4294901760
    %v773 = vsub.f32 %v81, %v772
    %v774 = vand.u32 %v773, 4294901760
    %775 = vmatpush1.msra.mxu0 %v774
    %v776 = vand.u32 %v84, 4294901760
    %v777 = vsub.f32 %v84, %v776
    %v778 = vand.u32 %v777, 4294901760
    %779 = vmatprep.subr.mxu0 %v778
    %v780 = vand.u32 %v83, 4294901760
    %v781 = vsub.f32 %v83, %v780
    %v782 = vand.u32 %v781, 4294901760
    %783 = vmatpush1.msra.mxu0 %v782
    %v784 = vand.u32 %v86, 4294901760
    %v785 = vsub.f32 %v86, %v784
    %v786 = vand.u32 %v785, 4294901760
    %787 = vmatprep.subr.mxu0 %v786
    %v788 = vand.u32 %v85, 4294901760
    %v789 = vsub.f32 %v85, %v788
    %v790 = vand.u32 %v789, 4294901760
    %791 = vmatpush1.msra.mxu0 %v790
    %v792 = vand.u32 %v88, 4294901760
    %v793 = vsub.f32 %v88, %v792
    %v794 = vand.u32 %v793, 4294901760
    %795 = vmatprep.subr.mxu0 %v794
    %v796 = vand.u32 %v87, 4294901760
    %v797 = vsub.f32 %v87, %v796
    %v798 = vand.u32 %v797, 4294901760
    %799 = vmatpush1.msra.mxu0 %v798
    %800 = vmatprep.subr.mxu0 0.0
    %801 = vmatpush1.msra.mxu0 0.0
    %802 = vmatprep.subr.mxu0 0.0
    %803 = vmatpush1.msra.mxu0 0.0
    %804 = vmatprep.subr.mxu0 0.0
    %805 = vmatpush1.msra.mxu0 0.0
    %806 = vmatprep.subr.mxu0 0.0
    %807 = vmatpush1.msra.mxu0 0.0
    %808 = vmatprep.subr.mxu0 0.0
    %809 = vmatpush1.msra.mxu0 0.0
    %810 = vmatprep.subr.mxu0 0.0
    %811 = vmatpush1.msra.mxu0 0.0
    %812 = vmatprep.subr.mxu0 0.0
    %813 = vmatpush1.msra.mxu0 0.0
    %814 = vmatprep.subr.mxu0 0.0
    %815 = vmatpush1.msra.mxu0 0.0
    %816 = vmatprep.subr.mxu0 0.0
    %817 = vmatpush1.msra.mxu0 0.0
    %818 = vmatprep.subr.mxu0 0.0
    %819 = vmatpush1.msra.mxu0 0.0
    %820 = vmatprep.subr.mxu0 0.0
    %821 = vmatpush1.msra.mxu0 0.0
    %822 = vmatprep.subr.mxu0 0.0
    %823 = vmatpush1.msra.mxu0 0.0
    %824 = vmatprep.subr.mxu0 0.0
    %825 = vmatpush1.msra.mxu0 0.0
    %826 = vmatprep.subr.mxu0 0.0
    %827 = vmatpush1.msra.mxu0 0.0
    %828 = vmatprep.subr.mxu0 0.0
    %829 = vmatpush1.msra.mxu0 0.0
    %830 = vmatprep.subr.mxu0 0.0
    %831 = vmatpush1.msra.mxu0 0.0
    %832 = vmatprep.mubr.f32.mxu0 0.0
    %v833 = vand.u32 %v56, 4294901760
    %834 = vmatmul.mubr.f32.gmra.mrb[0].mxu0 %v833
    %v835 = vpop.f32.mrb[0].mxu0
    %v836 = vadd.f32 %v668, %v835
    %v837 = vpop.f32.mrb[0].mxu0
    %v838 = vadd.f32 %v670, %v837
    %839 = vdwg.mxu0
    %v840 = vand.u32 %v58, 4294901760
    %841 = vmatprep.subr.mxu0 %v840
    %v842 = vand.u32 %v57, 4294901760
    %843 = vmatpush1.msra.mxu0 %v842
    %v844 = vand.u32 %v60, 4294901760
    %845 = vmatprep.subr.mxu0 %v844
    %v846 = vand.u32 %v59, 4294901760
    %847 = vmatpush1.msra.mxu0 %v846
    %v848 = vand.u32 %v62, 4294901760
    %849 = vmatprep.subr.mxu0 %v848
    %v850 = vand.u32 %v61, 4294901760
    %851 = vmatpush1.msra.mxu0 %v850
    %v852 = vand.u32 %v64, 4294901760
    %853 = vmatprep.subr.mxu0 %v852
    %v854 = vand.u32 %v63, 4294901760
    %855 = vmatpush1.msra.mxu0 %v854
    %v856 = vand.u32 %v66, 4294901760
    %857 = vmatprep.subr.mxu0 %v856
    %v858 = vand.u32 %v65, 4294901760
    %859 = vmatpush1.msra.mxu0 %v858
    %v860 = vand.u32 %v68, 4294901760
    %861 = vmatprep.subr.mxu0 %v860
    %v862 = vand.u32 %v67, 4294901760
    %863 = vmatpush1.msra.mxu0 %v862
    %v864 = vand.u32 %v70, 4294901760
    %865 = vmatprep.subr.mxu0 %v864
    %v866 = vand.u32 %v69, 4294901760
    %867 = vmatpush1.msra.mxu0 %v866
    %v868 = vand.u32 %v72, 4294901760
    %869 = vmatprep.subr.mxu0 %v868
    %v870 = vand.u32 %v71, 4294901760
    %871 = vmatpush1.msra.mxu0 %v870
    %v872 = vand.u32 %v74, 4294901760
    %873 = vmatprep.subr.mxu0 %v872
    %v874 = vand.u32 %v73, 4294901760
    %875 = vmatpush1.msra.mxu0 %v874
    %v876 = vand.u32 %v76, 4294901760
    %877 = vmatprep.subr.mxu0 %v876
    %v878 = vand.u32 %v75, 4294901760
    %879 = vmatpush1.msra.mxu0 %v878
    %v880 = vand.u32 %v78, 4294901760
    %881 = vmatprep.subr.mxu0 %v880
    %v882 = vand.u32 %v77, 4294901760
    %883 = vmatpush1.msra.mxu0 %v882
    %v884 = vand.u32 %v80, 4294901760
    %885 = vmatprep.subr.mxu0 %v884
    %v886 = vand.u32 %v79, 4294901760
    %887 = vmatpush1.msra.mxu0 %v886
    %v888 = vand.u32 %v82, 4294901760
    %889 = vmatprep.subr.mxu0 %v888
    %v890 = vand.u32 %v81, 4294901760
    %891 = vmatpush1.msra.mxu0 %v890
    %v892 = vand.u32 %v84, 4294901760
    %893 = vmatprep.subr.mxu0 %v892
    %v894 = vand.u32 %v83, 4294901760
    %895 = vmatpush1.msra.mxu0 %v894
    %v896 = vand.u32 %v86, 4294901760
    %897 = vmatprep.subr.mxu0 %v896
    %v898 = vand.u32 %v85, 4294901760
    %899 = vmatpush1.msra.mxu0 %v898
    %v900 = vand.u32 %v88, 4294901760
    %901 = vmatprep.subr.mxu0 %v900
    %v902 = vand.u32 %v87, 4294901760
    %903 = vmatpush1.msra.mxu0 %v902
    %904 = vmatprep.subr.mxu0 0.0
    %905 = vmatpush1.msra.mxu0 0.0
    %906 = vmatprep.subr.mxu0 0.0
    %907 = vmatpush1.msra.mxu0 0.0
    %908 = vmatprep.subr.mxu0 0.0
    %909 = vmatpush1.msra.mxu0 0.0
    %910 = vmatprep.subr.mxu0 0.0
    %911 = vmatpush1.msra.mxu0 0.0
    %912 = vmatprep.subr.mxu0 0.0
    %913 = vmatpush1.msra.mxu0 0.0
    %914 = vmatprep.subr.mxu0 0.0
    %915 = vmatpush1.msra.mxu0 0.0
    %916 = vmatprep.subr.mxu0 0.0
    %917 = vmatpush1.msra.mxu0 0.0
    %918 = vmatprep.subr.mxu0 0.0
    %919 = vmatpush1.msra.mxu0 0.0
    %920 = vmatprep.subr.mxu0 0.0
    %921 = vmatpush1.msra.mxu0 0.0
    %922 = vmatprep.subr.mxu0 0.0
    %923 = vmatpush1.msra.mxu0 0.0
    %924 = vmatprep.subr.mxu0 0.0
    %925 = vmatpush1.msra.mxu0 0.0
    %926 = vmatprep.subr.mxu0 0.0
    %927 = vmatpush1.msra.mxu0 0.0
    %928 = vmatprep.subr.mxu0 0.0
    %929 = vmatpush1.msra.mxu0 0.0
    %930 = vmatprep.subr.mxu0 0.0
    %931 = vmatpush1.msra.mxu0 0.0
    %932 = vmatprep.subr.mxu0 0.0
    %933 = vmatpush1.msra.mxu0 0.0
    %934 = vmatprep.subr.mxu0 0.0
    %935 = vmatpush1.msra.mxu0 0.0
    %936 = vmatprep.mubr.f32.mxu0 0.0
    %v937 = vand.u32 %v56, 4294901760
    %938 = vmatmul.mubr.f32.gmra.mrb[0].mxu0 %v937
    %v939 = vpop.f32.mrb[0].mxu0
    %v940 = vadd.f32 %v836, %v939
    %v941 = vpop.f32.mrb[0].mxu0
    %v942 = vadd.f32 %v838, %v941
    %943 = vdwg.mxu0
    %944 = vst [vmem:[#allocation5] sm:$0xff] %v940
    %945 = vst [vmem:[#allocation5 + $0x8] sm:$0xff] %v942
    // Predicated region
    $region14: #{tpu_custom_call.1} parent=1 // pred_check
      _
    $region15: #{tpu_custom_call.1} parent=1 // pred_check_branch
      %947 = sbr.rel (0) target = $region17
    $region16: #{tpu_custom_call.1} parent=1 // pred_region
      %s949 = ssub.s32 256, 256
      %950 = vsyncadd [#allocation4], %s949
      %s952 = sshll.u32 [#allocation5], 4
      %s953 = int_to_ptr.vmem [resolvable:$true] %s952
      %955 = dma.vmem_to_hbm [thread:$0]  %s953, 256, %s2, [#allocation4]
    $region17: #{tpu_custom_call.1} parent=1 // pred_fallthru
      _
    // Predicated region
    $region18: #{tpu_custom_call.1} parent=1 // pred_check
      _
    $region19: #{tpu_custom_call.1} parent=1 // pred_check_branch
      %957 = sbr.rel (0) target = $region21
    $region20: #{tpu_custom_call.1} parent=1 // pred_region
      %958 = dma.done [#allocation4], 256
    $region21: #{tpu_custom_call.1} parent=1 // pred_fallthru
      _
    %959 = vsyncpa [#allocation3], 1
    %960 = vsyncpa [#allocation4], 1

// kernel: tpu_custom_call.1
$region0: #{tpu_custom_call.1}
  #allocation0 [shape = 'u32[]', space=smem, size = 0x4, offset = 0x4, fixed_abs, tag = 'smem constant byte address 0x4 - core index']
  #allocation1 [shape = 'u32[144,128]{1,0:T(1,128)}', space=vmem, size = 0x12000, scoped, tag = 'internal scratch']
  %s0 = inlined_call_operand.vmem [shape: s32[8,4], index: 0, kind: input, shape index: {}]
  %s1 = inlined_call_operand.hbm [shape: f32[128,256], index: 1, kind: input, shape index: {}]
  %s2 = inlined_call_operand.hbm [shape: f32[8,256], index: 2, kind: output, shape index: {}]
  %s3 = sld [smem:[#allocation0]]
  $region22: #{tpu_custom_call.1} parent=0
    _
  %s5 = ssub.s32 1, %s3
  %s6 = scalar_select 0, %s5, %s3
  $region1: #{tpu_custom_call.1} parent=0
    #allocation2 [shape = 'u8[131072]{0}', space=vmem, size = 0x20000, scoped, tag = 'input window, operand 1, single buffered']
    #allocation3 [shape = 's32[1]{0}', space=sflag, size = 0x4, scoped, tag = 'scoped memory for tpu_custom_call.1']
    #allocation4 [shape = 's32[1]{0}', space=sflag, size = 0x4, scoped, tag = 'scoped memory for tpu_custom_call.1']
    #allocation5 [shape = 'u8[8192]{0}', space=vmem, size = 0x2000, scoped, tag = 'output window, operand 0, single buffered']
    %7 = vsyncpa [#allocation3], 0
    %8 = vsyncpa [#allocation4], 0
    // Predicated region
    $region2: #{tpu_custom_call.1} parent=1 // pred_check
      _
    $region3: #{tpu_custom_call.1} parent=1 // pred_check_branch
      %10 = sbr.rel (0) target = $region5
    $region4: #{tpu_custom_call.1} parent=1 // pred_region
      _
    $region5: #{tpu_custom_call.1} parent=1 // pred_fallthru
      _
    // Predicated region
    $region6: #{tpu_custom_call.1} parent=1 // pred_check
      _
    $region7: #{tpu_custom_call.1} parent=1 // pred_check_branch
      %12 = sbr.rel (0) target = $region9
    $region8: #{tpu_custom_call.1} parent=1 // pred_region
      %s14 = ssub.s32 4096, 4096
      %15 = vsyncadd [#allocation3], %s14
      %s16 = sshll.u32 [#allocation2], 4
      %s17 = int_to_ptr.vmem [resolvable:$true] %s16
      %22 = dma.hbm_to_vmem [thread:$0]  %s1, 4096, %s17, [#allocation3], 256, 256, 16
    $region9: #{tpu_custom_call.1} parent=1 // pred_fallthru
      _
    // Predicated region
    $region10: #{tpu_custom_call.1} parent=1 // pred_check
      _
    $region11: #{tpu_custom_call.1} parent=1 // pred_check_branch
      %24 = sbr.rel (0) target = $region13
    $region12: #{tpu_custom_call.1} parent=1 // pred_region
      %25 = dma.done [#allocation3], 4096
    $region13: #{tpu_custom_call.1} parent=1 // pred_fallthru
      _
    %v26 = vld [vmem:[%s0] sm:$0xff]
    %v27 = vlaneseq
    %v28 = vand.u32 %v27, 127
    %29 = vset.pattern.permute.xlu0 0
    %30 = vperm.xlu0 %29, %v26
    %v31 = vpop.permute.xlu0 %30
    %vm32 = vcmp.eq.s32.totalorder %v28, %v31
    %v33 = vsel %vm32, 1, 0
    %v34 = vcvt.s32.f32 %v33
    %v35 = vadd.f32 %v34, 0.0
    %36 = vset.pattern.permute.xlu0 1
    %37 = vperm.xlu0 %36, %v26
    %v38 = vpop.permute.xlu0 %37
    %vm39 = vcmp.eq.s32.totalorder %v28, %v38
    %v40 = vsel %vm39, 1, 0
    %v41 = vcvt.s32.f32 %v40
    %v42 = vadd.f32 %v35, %v41
    %43 = vset.pattern.permute.xlu0 2
    %44 = vperm.xlu0 %43, %v26
    %v45 = vpop.permute.xlu0 %44
    %vm46 = vcmp.eq.s32.totalorder %v28, %v45
    %v47 = vsel %vm46, 1, 0
    %v48 = vcvt.s32.f32 %v47
    %v49 = vadd.f32 %v42, %v48
    %50 = vset.pattern.permute.xlu0 3
    %51 = vperm.xlu0 %50, %v26
    %v52 = vpop.permute.xlu0 %51
    %vm53 = vcmp.eq.s32.totalorder %v28, %v52
    %v54 = vsel %vm53, 1, 0
    %v55 = vcvt.s32.f32 %v54
    %v56 = vadd.f32 %v49, %v55
    %v57 = vld [vmem:[#allocation2] sm:$0xff]
    %v58 = vld [vmem:[#allocation2 + $0x8] sm:$0xff]
    %v59 = vld [vmem:[#allocation2 + $0x10] sm:$0xff]
    %v60 = vld [vmem:[#allocation2 + $0x18] sm:$0xff]
    %v61 = vld [vmem:[#allocation2 + $0x20] sm:$0xff]
    %v62 = vld [vmem:[#allocation2 + $0x28] sm:$0xff]
    %v63 = vld [vmem:[#allocation2 + $0x30] sm:$0xff]
    %v64 = vld [vmem:[#allocation2 + $0x38] sm:$0xff]
    %v65 = vld [vmem:[#allocation2 + $0x40] sm:$0xff]
    %v66 = vld [vmem:[#allocation2 + $0x48] sm:$0xff]
    %v67 = vld [vmem:[#allocation2 + $0x50] sm:$0xff]
    %v68 = vld [vmem:[#allocation2 + $0x58] sm:$0xff]
    %v69 = vld [vmem:[#allocation2 + $0x60] sm:$0xff]
    %v70 = vld [vmem:[#allocation2 + $0x68] sm:$0xff]
    %v71 = vld [vmem:[#allocation2 + $0x70] sm:$0xff]
    %v72 = vld [vmem:[#allocation2 + $0x78] sm:$0xff]
    %v73 = vld [vmem:[#allocation2 + $0x80] sm:$0xff]
    %v74 = vld [vmem:[#allocation2 + $0x88] sm:$0xff]
    %v75 = vld [vmem:[#allocation2 + $0x90] sm:$0xff]
    %v76 = vld [vmem:[#allocation2 + $0x98] sm:$0xff]
    %v77 = vld [vmem:[#allocation2 + $0xa0] sm:$0xff]
    %v78 = vld [vmem:[#allocation2 + $0xa8] sm:$0xff]
    %v79 = vld [vmem:[#allocation2 + $0xb0] sm:$0xff]
    %v80 = vld [vmem:[#allocation2 + $0xb8] sm:$0xff]
    %v81 = vld [vmem:[#allocation2 + $0xc0] sm:$0xff]
    %v82 = vld [vmem:[#allocation2 + $0xc8] sm:$0xff]
    %v83 = vld [vmem:[#allocation2 + $0xd0] sm:$0xff]
    %v84 = vld [vmem:[#allocation2 + $0xd8] sm:$0xff]
    %v85 = vld [vmem:[#allocation2 + $0xe0] sm:$0xff]
    %v86 = vld [vmem:[#allocation2 + $0xe8] sm:$0xff]
    %v87 = vld [vmem:[#allocation2 + $0xf0] sm:$0xff]
    %v88 = vld [vmem:[#allocation2 + $0xf8] sm:$0xff]
    %v89 = vand.u32 %v58, 4294901760
    %90 = vmatprep.subr.mxu0 %v89
    %v91 = vand.u32 %v57, 4294901760
    %92 = vmatpush1.msra.mxu0 %v91
    %v93 = vand.u32 %v60, 4294901760
    %94 = vmatprep.subr.mxu0 %v93
    %v95 = vand.u32 %v59, 4294901760
    %96 = vmatpush1.msra.mxu0 %v95
    %v97 = vand.u32 %v62, 4294901760
    %98 = vmatprep.subr.mxu0 %v97
    %v99 = vand.u32 %v61, 4294901760
    %100 = vmatpush1.msra.mxu0 %v99
    %v101 = vand.u32 %v64, 4294901760
    %102 = vmatprep.subr.mxu0 %v101
    %v103 = vand.u32 %v63, 4294901760
    %104 = vmatpush1.msra.mxu0 %v103
    %v105 = vand.u32 %v66, 4294901760
    %106 = vmatprep.subr.mxu0 %v105
    %v107 = vand.u32 %v65, 4294901760
    %108 = vmatpush1.msra.mxu0 %v107
    %v109 = vand.u32 %v68, 4294901760
    %110 = vmatprep.subr.mxu0 %v109
    %v111 = vand.u32 %v67, 4294901760
    %112 = vmatpush1.msra.mxu0 %v111
    %v113 = vand.u32 %v70, 4294901760
    %114 = vmatprep.subr.mxu0 %v113
    %v115 = vand.u32 %v69, 4294901760
    %116 = vmatpush1.msra.mxu0 %v115
    %v117 = vand.u32 %v72, 4294901760
    %118 = vmatprep.subr.mxu0 %v117
    %v119 = vand.u32 %v71, 4294901760
    %120 = vmatpush1.msra.mxu0 %v119
    %v121 = vand.u32 %v74, 4294901760
    %122 = vmatprep.subr.mxu0 %v121
    %v123 = vand.u32 %v73, 4294901760
    %124 = vmatpush1.msra.mxu0 %v123
    %v125 = vand.u32 %v76, 4294901760
    %126 = vmatprep.subr.mxu0 %v125
    %v127 = vand.u32 %v75, 4294901760
    %128 = vmatpush1.msra.mxu0 %v127
    %v129 = vand.u32 %v78, 4294901760
    %130 = vmatprep.subr.mxu0 %v129
    %v131 = vand.u32 %v77, 4294901760
    %132 = vmatpush1.msra.mxu0 %v131
    %v133 = vand.u32 %v80, 4294901760
    %134 = vmatprep.subr.mxu0 %v133
    %v135 = vand.u32 %v79, 4294901760
    %136 = vmatpush1.msra.mxu0 %v135
    %v137 = vand.u32 %v82, 4294901760
    %138 = vmatprep.subr.mxu0 %v137
    %v139 = vand.u32 %v81, 4294901760
    %140 = vmatpush1.msra.mxu0 %v139
    %v141 = vand.u32 %v84, 4294901760
    %142 = vmatprep.subr.mxu0 %v141
    %v143 = vand.u32 %v83, 4294901760
    %144 = vmatpush1.msra.mxu0 %v143
    %v145 = vand.u32 %v86, 4294901760
    %146 = vmatprep.subr.mxu0 %v145
    %v147 = vand.u32 %v85, 4294901760
    %148 = vmatpush1.msra.mxu0 %v147
    %v149 = vand.u32 %v88, 4294901760
    %150 = vmatprep.subr.mxu0 %v149
    %v151 = vand.u32 %v87, 4294901760
    %152 = vmatpush1.msra.mxu0 %v151
    %153 = vmatprep.subr.mxu0 0.0
    %154 = vmatpush1.msra.mxu0 0.0
    %155 = vmatprep.subr.mxu0 0.0
    %156 = vmatpush1.msra.mxu0 0.0
    %157 = vmatprep.subr.mxu0 0.0
    %158 = vmatpush1.msra.mxu0 0.0
    %159 = vmatprep.subr.mxu0 0.0
    %160 = vmatpush1.msra.mxu0 0.0
    %161 = vmatprep.subr.mxu0 0.0
    %162 = vmatpush1.msra.mxu0 0.0
    %163 = vmatprep.subr.mxu0 0.0
    %164 = vmatpush1.msra.mxu0 0.0
    %165 = vmatprep.subr.mxu0 0.0
    %166 = vmatpush1.msra.mxu0 0.0
    %167 = vmatprep.subr.mxu0 0.0
    %168 = vmatpush1.msra.mxu0 0.0
    %169 = vmatprep.subr.mxu0 0.0
    %170 = vmatpush1.msra.mxu0 0.0
    %171 = vmatprep.subr.mxu0 0.0
    %172 = vmatpush1.msra.mxu0 0.0
    %173 = vmatprep.subr.mxu0 0.0
    %174 = vmatpush1.msra.mxu0 0.0
    %175 = vmatprep.subr.mxu0 0.0
    %176 = vmatpush1.msra.mxu0 0.0
    %177 = vmatprep.subr.mxu0 0.0
    %178 = vmatpush1.msra.mxu0 0.0
    %179 = vmatprep.subr.mxu0 0.0
    %180 = vmatpush1.msra.mxu0 0.0
    %181 = vmatprep.subr.mxu0 0.0
    %182 = vmatpush1.msra.mxu0 0.0
    %183 = vmatprep.subr.mxu0 0.0
    %184 = vmatpush1.msra.mxu0 0.0
    %185 = vmatprep.mubr.f32.mxu0 0.0
    %v186 = vand.u32 %v56, 4294901760
    %v187 = vsub.f32 %v56, %v186
    %v188 = vand.u32 %v187, 4294901760
    %v189 = vsub.f32 %v187, %v188
    %v190 = vand.u32 %v189, 4294901760
    %191 = vmatmul.mubr.f32.gmra.mrb[0].mxu0 %v190
    %v192 = vpop.f32.mrb[0].mxu0
    %v193 = vadd.f32 0.0, %v192
    %v194 = vpop.f32.mrb[0].mxu0
    %v195 = vadd.f32 0.0, %v194
    %196 = vdwg.mxu0
    %v197 = vand.u32 %v58, 4294901760
    %v198 = vsub.f32 %v58, %v197
    %v199 = vand.u32 %v198, 4294901760
    %v200 = vsub.f32 %v198, %v199
    %v201 = vand.u32 %v200, 4294901760
    %202 = vmatprep.subr.mxu0 %v201
    %v203 = vand.u32 %v57, 4294901760
    %v204 = vsub.f32 %v57, %v203
    %v205 = vand.u32 %v204, 4294901760
    %v206 = vsub.f32 %v204, %v205
    %v207 = vand.u32 %v206, 4294901760
    %208 = vmatpush1.msra.mxu0 %v207
    %v209 = vand.u32 %v60, 4294901760
    %v210 = vsub.f32 %v60, %v209
    %v211 = vand.u32 %v210, 4294901760
    %v212 = vsub.f32 %v210, %v211
    %v213 = vand.u32 %v212, 4294901760
    %214 = vmatprep.subr.mxu0 %v213
    %v215 = vand.u32 %v59, 4294901760
    %v216 = vsub.f32 %v59, %v215
    %v217 = vand.u32 %v216, 4294901760
    %v218 = vsub.f32 %v216, %v217
    %v219 = vand.u32 %v218, 4294901760
    %220 = vmatpush1.msra.mxu0 %v219
    %v221 = vand.u32 %v62, 4294901760
    %v222 = vsub.f32 %v62, %v221
    %v223 = vand.u32 %v222, 4294901760
    %v224 = vsub.f32 %v222, %v223
    %v225 = vand.u32 %v224, 4294901760
    %226 = vmatprep.subr.mxu0 %v225
    %v227 = vand.u32 %v61, 4294901760
    %v228 = vsub.f32 %v61, %v227
    %v229 = vand.u32 %v228, 4294901760
    %v230 = vsub.f32 %v228, %v229
    %v231 = vand.u32 %v230, 4294901760
    %232 = vmatpush1.msra.mxu0 %v231
    %v233 = vand.u32 %v64, 4294901760
    %v234 = vsub.f32 %v64, %v233
    %v235 = vand.u32 %v234, 4294901760
    %v236 = vsub.f32 %v234, %v235
    %v237 = vand.u32 %v236, 4294901760
    %238 = vmatprep.subr.mxu0 %v237
    %v239 = vand.u32 %v63, 4294901760
    %v240 = vsub.f32 %v63, %v239
    %v241 = vand.u32 %v240, 4294901760
    %v242 = vsub.f32 %v240, %v241
    %v243 = vand.u32 %v242, 4294901760
    %244 = vmatpush1.msra.mxu0 %v243
    %v245 = vand.u32 %v66, 4294901760
    %v246 = vsub.f32 %v66, %v245
    %v247 = vand.u32 %v246, 4294901760
    %v248 = vsub.f32 %v246, %v247
    %v249 = vand.u32 %v248, 4294901760
    %250 = vmatprep.subr.mxu0 %v249
    %v251 = vand.u32 %v65, 4294901760
    %v252 = vsub.f32 %v65, %v251
    %v253 = vand.u32 %v252, 4294901760
    %v254 = vsub.f32 %v252, %v253
    %v255 = vand.u32 %v254, 4294901760
    %256 = vmatpush1.msra.mxu0 %v255
    %v257 = vand.u32 %v68, 4294901760
    %v258 = vsub.f32 %v68, %v257
    %v259 = vand.u32 %v258, 4294901760
    %v260 = vsub.f32 %v258, %v259
    %v261 = vand.u32 %v260, 4294901760
    %262 = vmatprep.subr.mxu0 %v261
    %v263 = vand.u32 %v67, 4294901760
    %v264 = vsub.f32 %v67, %v263
    %v265 = vand.u32 %v264, 4294901760
    %v266 = vsub.f32 %v264, %v265
    %v267 = vand.u32 %v266, 4294901760
    %268 = vmatpush1.msra.mxu0 %v267
    %v269 = vand.u32 %v70, 4294901760
    %v270 = vsub.f32 %v70, %v269
    %v271 = vand.u32 %v270, 4294901760
    %v272 = vsub.f32 %v270, %v271
    %v273 = vand.u32 %v272, 4294901760
    %274 = vmatprep.subr.mxu0 %v273
    %v275 = vand.u32 %v69, 4294901760
    %v276 = vsub.f32 %v69, %v275
    %v277 = vand.u32 %v276, 4294901760
    %v278 = vsub.f32 %v276, %v277
    %v279 = vand.u32 %v278, 4294901760
    %280 = vmatpush1.msra.mxu0 %v279
    %v281 = vand.u32 %v72, 4294901760
    %v282 = vsub.f32 %v72, %v281
    %v283 = vand.u32 %v282, 4294901760
    %v284 = vsub.f32 %v282, %v283
    %v285 = vand.u32 %v284, 4294901760
    %286 = vmatprep.subr.mxu0 %v285
    %v287 = vand.u32 %v71, 4294901760
    %v288 = vsub.f32 %v71, %v287
    %v289 = vand.u32 %v288, 4294901760
    %v290 = vsub.f32 %v288, %v289
    %v291 = vand.u32 %v290, 4294901760
    %292 = vmatpush1.msra.mxu0 %v291
    %v293 = vand.u32 %v74, 4294901760
    %v294 = vsub.f32 %v74, %v293
    %v295 = vand.u32 %v294, 4294901760
    %v296 = vsub.f32 %v294, %v295
    %v297 = vand.u32 %v296, 4294901760
    %298 = vmatprep.subr.mxu0 %v297
    %v299 = vand.u32 %v73, 4294901760
    %v300 = vsub.f32 %v73, %v299
    %v301 = vand.u32 %v300, 4294901760
    %v302 = vsub.f32 %v300, %v301
    %v303 = vand.u32 %v302, 4294901760
    %304 = vmatpush1.msra.mxu0 %v303
    %v305 = vand.u32 %v76, 4294901760
    %v306 = vsub.f32 %v76, %v305
    %v307 = vand.u32 %v306, 4294901760
    %v308 = vsub.f32 %v306, %v307
    %v309 = vand.u32 %v308, 4294901760
    %310 = vmatprep.subr.mxu0 %v309
    %v311 = vand.u32 %v75, 4294901760
    %v312 = vsub.f32 %v75, %v311
    %v313 = vand.u32 %v312, 4294901760
    %v314 = vsub.f32 %v312, %v313
    %v315 = vand.u32 %v314, 4294901760
    %316 = vmatpush1.msra.mxu0 %v315
    %v317 = vand.u32 %v78, 4294901760
    %v318 = vsub.f32 %v78, %v317
    %v319 = vand.u32 %v318, 4294901760
    %v320 = vsub.f32 %v318, %v319
    %v321 = vand.u32 %v320, 4294901760
    %322 = vmatprep.subr.mxu0 %v321
    %v323 = vand.u32 %v77, 4294901760
    %v324 = vsub.f32 %v77, %v323
    %v325 = vand.u32 %v324, 4294901760
    %v326 = vsub.f32 %v324, %v325
    %v327 = vand.u32 %v326, 4294901760
    %328 = vmatpush1.msra.mxu0 %v327
    %v329 = vand.u32 %v80, 4294901760
    %v330 = vsub.f32 %v80, %v329
    %v331 = vand.u32 %v330, 4294901760
    %v332 = vsub.f32 %v330, %v331
    %v333 = vand.u32 %v332, 4294901760
    %334 = vmatprep.subr.mxu0 %v333
    %v335 = vand.u32 %v79, 4294901760
    %v336 = vsub.f32 %v79, %v335
    %v337 = vand.u32 %v336, 4294901760
    %v338 = vsub.f32 %v336, %v337
    %v339 = vand.u32 %v338, 4294901760
    %340 = vmatpush1.msra.mxu0 %v339
    %v341 = vand.u32 %v82, 4294901760
    %v342 = vsub.f32 %v82, %v341
    %v343 = vand.u32 %v342, 4294901760
    %v344 = vsub.f32 %v342, %v343
    %v345 = vand.u32 %v344, 4294901760
    %346 = vmatprep.subr.mxu0 %v345
    %v347 = vand.u32 %v81, 4294901760
    %v348 = vsub.f32 %v81, %v347
    %v349 = vand.u32 %v348, 4294901760
    %v350 = vsub.f32 %v348, %v349
    %v351 = vand.u32 %v350, 4294901760
    %352 = vmatpush1.msra.mxu0 %v351
    %v353 = vand.u32 %v84, 4294901760
    %v354 = vsub.f32 %v84, %v353
    %v355 = vand.u32 %v354, 4294901760
    %v356 = vsub.f32 %v354, %v355
    %v357 = vand.u32 %v356, 4294901760
    %358 = vmatprep.subr.mxu0 %v357
    %v359 = vand.u32 %v83, 4294901760
    %v360 = vsub.f32 %v83, %v359
    %v361 = vand.u32 %v360, 4294901760
    %v362 = vsub.f32 %v360, %v361
    %v363 = vand.u32 %v362, 4294901760
    %364 = vmatpush1.msra.mxu0 %v363
    %v365 = vand.u32 %v86, 4294901760
    %v366 = vsub.f32 %v86, %v365
    %v367 = vand.u32 %v366, 4294901760
    %v368 = vsub.f32 %v366, %v367
    %v369 = vand.u32 %v368, 4294901760
    %370 = vmatprep.subr.mxu0 %v369
    %v371 = vand.u32 %v85, 4294901760
    %v372 = vsub.f32 %v85, %v371
    %v373 = vand.u32 %v372, 4294901760
    %v374 = vsub.f32 %v372, %v373
    %v375 = vand.u32 %v374, 4294901760
    %376 = vmatpush1.msra.mxu0 %v375
    %v377 = vand.u32 %v88, 4294901760
    %v378 = vsub.f32 %v88, %v377
    %v379 = vand.u32 %v378, 4294901760
    %v380 = vsub.f32 %v378, %v379
    %v381 = vand.u32 %v380, 4294901760
    %382 = vmatprep.subr.mxu0 %v381
    %v383 = vand.u32 %v87, 4294901760
    %v384 = vsub.f32 %v87, %v383
    %v385 = vand.u32 %v384, 4294901760
    %v386 = vsub.f32 %v384, %v385
    %v387 = vand.u32 %v386, 4294901760
    %388 = vmatpush1.msra.mxu0 %v387
    %389 = vmatprep.subr.mxu0 0.0
    %390 = vmatpush1.msra.mxu0 0.0
    %391 = vmatprep.subr.mxu0 0.0
    %392 = vmatpush1.msra.mxu0 0.0
    %393 = vmatprep.subr.mxu0 0.0
    %394 = vmatpush1.msra.mxu0 0.0
    %395 = vmatprep.subr.mxu0 0.0
    %396 = vmatpush1.msra.mxu0 0.0
    %397 = vmatprep.subr.mxu0 0.0
    %398 = vmatpush1.msra.mxu0 0.0
    %399 = vmatprep.subr.mxu0 0.0
    %400 = vmatpush1.msra.mxu0 0.0
    %401 = vmatprep.subr.mxu0 0.0
    %402 = vmatpush1.msra.mxu0 0.0
    %403 = vmatprep.subr.mxu0 0.0
    %404 = vmatpush1.msra.mxu0 0.0
    %405 = vmatprep.subr.mxu0 0.0
    %406 = vmatpush1.msra.mxu0 0.0
    %407 = vmatprep.subr.mxu0 0.0
    %408 = vmatpush1.msra.mxu0 0.0
    %409 = vmatprep.subr.mxu0 0.0
    %410 = vmatpush1.msra.mxu0 0.0
    %411 = vmatprep.subr.mxu0 0.0
    %412 = vmatpush1.msra.mxu0 0.0
    %413 = vmatprep.subr.mxu0 0.0
    %414 = vmatpush1.msra.mxu0 0.0
    %415 = vmatprep.subr.mxu0 0.0
    %416 = vmatpush1.msra.mxu0 0.0
    %417 = vmatprep.subr.mxu0 0.0
    %418 = vmatpush1.msra.mxu0 0.0
    %419 = vmatprep.subr.mxu0 0.0
    %420 = vmatpush1.msra.mxu0 0.0
    %421 = vmatprep.mubr.f32.mxu0 0.0
    %v422 = vand.u32 %v56, 4294901760
    %423 = vmatmul.mubr.f32.gmra.mrb[0].mxu0 %v422
    %v424 = vpop.f32.mrb[0].mxu0
    %v425 = vadd.f32 %v193, %v424
    %v426 = vpop.f32.mrb[0].mxu0
    %v427 = vadd.f32 %v195, %v426
    %428 = vdwg.mxu0
    %v429 = vand.u32 %v58, 4294901760
    %v430 = vsub.f32 %v58, %v429
    %431 = vmatprep.subr.mxu0 %v430
    %v432 = vand.u32 %v57, 4294901760
    %v433 = vsub.f32 %v57, %v432
    %434 = vmatpush1.msra.mxu0 %v433
    %v435 = vand.u32 %v60, 4294901760
    %v436 = vsub.f32 %v60, %v435
    %437 = vmatprep.subr.mxu0 %v436
    %v438 = vand.u32 %v59, 4294901760
    %v439 = vsub.f32 %v59, %v438
    %440 = vmatpush1.msra.mxu0 %v439
    %v441 = vand.u32 %v62, 4294901760
    %v442 = vsub.f32 %v62, %v441
    %443 = vmatprep.subr.mxu0 %v442
    %v444 = vand.u32 %v61, 4294901760
    %v445 = vsub.f32 %v61, %v444
    %446 = vmatpush1.msra.mxu0 %v445
    %v447 = vand.u32 %v64, 4294901760
    %v448 = vsub.f32 %v64, %v447
    %449 = vmatprep.subr.mxu0 %v448
    %v450 = vand.u32 %v63, 4294901760
    %v451 = vsub.f32 %v63, %v450
    %452 = vmatpush1.msra.mxu0 %v451
    %v453 = vand.u32 %v66, 4294901760
    %v454 = vsub.f32 %v66, %v453
    %455 = vmatprep.subr.mxu0 %v454
    %v456 = vand.u32 %v65, 4294901760
    %v457 = vsub.f32 %v65, %v456
    %458 = vmatpush1.msra.mxu0 %v457
    %v459 = vand.u32 %v68, 4294901760
    %v460 = vsub.f32 %v68, %v459
    %461 = vmatprep.subr.mxu0 %v460
    %v462 = vand.u32 %v67, 4294901760
    %v463 = vsub.f32 %v67, %v462
    %464 = vmatpush1.msra.mxu0 %v463
    %v465 = vand.u32 %v70, 4294901760
    %v466 = vsub.f32 %v70, %v465
    %467 = vmatprep.subr.mxu0 %v466
    %v468 = vand.u32 %v69, 4294901760
    %v469 = vsub.f32 %v69, %v468
    %470 = vmatpush1.msra.mxu0 %v469
    %v471 = vand.u32 %v72, 4294901760
    %v472 = vsub.f32 %v72, %v471
    %473 = vmatprep.subr.mxu0 %v472
    %v474 = vand.u32 %v71, 4294901760
    %v475 = vsub.f32 %v71, %v474
    %476 = vmatpush1.msra.mxu0 %v475
    %v477 = vand.u32 %v74, 4294901760
    %v478 = vsub.f32 %v74, %v477
    %479 = vmatprep.subr.mxu0 %v478
    %v480 = vand.u32 %v73, 4294901760
    %v481 = vsub.f32 %v73, %v480
    %482 = vmatpush1.msra.mxu0 %v481
    %v483 = vand.u32 %v76, 4294901760
    %v484 = vsub.f32 %v76, %v483
    %485 = vmatprep.subr.mxu0 %v484
    %v486 = vand.u32 %v75, 4294901760
    %v487 = vsub.f32 %v75, %v486
    %488 = vmatpush1.msra.mxu0 %v487
    %v489 = vand.u32 %v78, 4294901760
    %v490 = vsub.f32 %v78, %v489
    %491 = vmatprep.subr.mxu0 %v490
    %v492 = vand.u32 %v77, 4294901760
    %v493 = vsub.f32 %v77, %v492
    %494 = vmatpush1.msra.mxu0 %v493
    %v495 = vand.u32 %v80, 4294901760
    %v496 = vsub.f32 %v80, %v495
    %497 = vmatprep.subr.mxu0 %v496
    %v498 = vand.u32 %v79, 4294901760
    %v499 = vsub.f32 %v79, %v498
    %500 = vmatpush1.msra.mxu0 %v499
    %v501 = vand.u32 %v82, 4294901760
    %v502 = vsub.f32 %v82, %v501
    %503 = vmatprep.subr.mxu0 %v502
    %v504 = vand.u32 %v81, 4294901760
    %v505 = vsub.f32 %v81, %v504
    %506 = vmatpush1.msra.mxu0 %v505
    %v507 = vand.u32 %v84, 4294901760
    %v508 = vsub.f32 %v84, %v507
    %509 = vmatprep.subr.mxu0 %v508
    %v510 = vand.u32 %v83, 4294901760
    %v511 = vsub.f32 %v83, %v510
    %512 = vmatpush1.msra.mxu0 %v511
    %v513 = vand.u32 %v86, 4294901760
    %v514 = vsub.f32 %v86, %v513
    %515 = vmatprep.subr.mxu0 %v514
    %v516 = vand.u32 %v85, 4294901760
    %v517 = vsub.f32 %v85, %v516
    %518 = vmatpush1.msra.mxu0 %v517
    %v519 = vand.u32 %v88, 4294901760
    %v520 = vsub.f32 %v88, %v519
    %521 = vmatprep.subr.mxu0 %v520
    %v522 = vand.u32 %v87, 4294901760
    %v523 = vsub.f32 %v87, %v522
    %524 = vmatpush1.msra.mxu0 %v523
    %525 = vmatprep.subr.mxu0 0.0
    %526 = vmatpush1.msra.mxu0 0.0
    %527 = vmatprep.subr.mxu0 0.0
    %528 = vmatpush1.msra.mxu0 0.0
    %529 = vmatprep.subr.mxu0 0.0
    %530 = vmatpush1.msra.mxu0 0.0
    %531 = vmatprep.subr.mxu0 0.0
    %532 = vmatpush1.msra.mxu0 0.0
    %533 = vmatprep.subr.mxu0 0.0
    %534 = vmatpush1.msra.mxu0 0.0
    %535 = vmatprep.subr.mxu0 0.0
    %536 = vmatpush1.msra.mxu0 0.0
    %537 = vmatprep.subr.mxu0 0.0
    %538 = vmatpush1.msra.mxu0 0.0
    %539 = vmatprep.subr.mxu0 0.0
    %540 = vmatpush1.msra.mxu0 0.0
    %541 = vmatprep.subr.mxu0 0.0
    %542 = vmatpush1.msra.mxu0 0.0
    %543 = vmatprep.subr.mxu0 0.0
    %544 = vmatpush1.msra.mxu0 0.0
    %545 = vmatprep.subr.mxu0 0.0
    %546 = vmatpush1.msra.mxu0 0.0
    %547 = vmatprep.subr.mxu0 0.0
    %548 = vmatpush1.msra.mxu0 0.0
    %549 = vmatprep.subr.mxu0 0.0
    %550 = vmatpush1.msra.mxu0 0.0
    %551 = vmatprep.subr.mxu0 0.0
    %552 = vmatpush1.msra.mxu0 0.0
    %553 = vmatprep.subr.mxu0 0.0
    %554 = vmatpush1.msra.mxu0 0.0
    %555 = vmatprep.subr.mxu0 0.0
    %556 = vmatpush1.msra.mxu0 0.0
    %557 = vmatprep.mubr.f32.mxu0 0.0
    %v558 = vand.u32 %v56, 4294901760
    %v559 = vsub.f32 %v56, %v558
    %560 = vmatmul.mubr.f32.gmra.mrb[0].mxu0 %v559
    %v561 = vpop.f32.mrb[0].mxu0
    %v562 = vadd.f32 %v425, %v561
    %v563 = vpop.f32.mrb[0].mxu0
    %v564 = vadd.f32 %v427, %v563
    %565 = vdwg.mxu0
    %v566 = vand.u32 %v58, 4294901760
    %567 = vmatprep.subr.mxu0 %v566
    %v568 = vand.u32 %v57, 4294901760
    %569 = vmatpush1.msra.mxu0 %v568
    %v570 = vand.u32 %v60, 4294901760
    %571 = vmatprep.subr.mxu0 %v570
    %v572 = vand.u32 %v59, 4294901760
    %573 = vmatpush1.msra.mxu0 %v572
    %v574 = vand.u32 %v62, 4294901760
    %575 = vmatprep.subr.mxu0 %v574
    %v576 = vand.u32 %v61, 4294901760
    %577 = vmatpush1.msra.mxu0 %v576
    %v578 = vand.u32 %v64, 4294901760
    %579 = vmatprep.subr.mxu0 %v578
    %v580 = vand.u32 %v63, 4294901760
    %581 = vmatpush1.msra.mxu0 %v580
    %v582 = vand.u32 %v66, 4294901760
    %583 = vmatprep.subr.mxu0 %v582
    %v584 = vand.u32 %v65, 4294901760
    %585 = vmatpush1.msra.mxu0 %v584
    %v586 = vand.u32 %v68, 4294901760
    %587 = vmatprep.subr.mxu0 %v586
    %v588 = vand.u32 %v67, 4294901760
    %589 = vmatpush1.msra.mxu0 %v588
    %v590 = vand.u32 %v70, 4294901760
    %591 = vmatprep.subr.mxu0 %v590
    %v592 = vand.u32 %v69, 4294901760
    %593 = vmatpush1.msra.mxu0 %v592
    %v594 = vand.u32 %v72, 4294901760
    %595 = vmatprep.subr.mxu0 %v594
    %v596 = vand.u32 %v71, 4294901760
    %597 = vmatpush1.msra.mxu0 %v596
    %v598 = vand.u32 %v74, 4294901760
    %599 = vmatprep.subr.mxu0 %v598
    %v600 = vand.u32 %v73, 4294901760
    %601 = vmatpush1.msra.mxu0 %v600
    %v602 = vand.u32 %v76, 4294901760
    %603 = vmatprep.subr.mxu0 %v602
    %v604 = vand.u32 %v75, 4294901760
    %605 = vmatpush1.msra.mxu0 %v604
    %v606 = vand.u32 %v78, 4294901760
    %607 = vmatprep.subr.mxu0 %v606
    %v608 = vand.u32 %v77, 4294901760
    %609 = vmatpush1.msra.mxu0 %v608
    %v610 = vand.u32 %v80, 4294901760
    %611 = vmatprep.subr.mxu0 %v610
    %v612 = vand.u32 %v79, 4294901760
    %613 = vmatpush1.msra.mxu0 %v612
    %v614 = vand.u32 %v82, 4294901760
    %615 = vmatprep.subr.mxu0 %v614
    %v616 = vand.u32 %v81, 4294901760
    %617 = vmatpush1.msra.mxu0 %v616
    %v618 = vand.u32 %v84, 4294901760
    %619 = vmatprep.subr.mxu0 %v618
    %v620 = vand.u32 %v83, 4294901760
    %621 = vmatpush1.msra.mxu0 %v620
    %v622 = vand.u32 %v86, 4294901760
    %623 = vmatprep.subr.mxu0 %v622
    %v624 = vand.u32 %v85, 4294901760
    %625 = vmatpush1.msra.mxu0 %v624
    %v626 = vand.u32 %v88, 4294901760
    %627 = vmatprep.subr.mxu0 %v626
    %v628 = vand.u32 %v87, 4294901760
    %629 = vmatpush1.msra.mxu0 %v628
    %630 = vmatprep.subr.mxu0 0.0
    %631 = vmatpush1.msra.mxu0 0.0
    %632 = vmatprep.subr.mxu0 0.0
    %633 = vmatpush1.msra.mxu0 0.0
    %634 = vmatprep.subr.mxu0 0.0
    %635 = vmatpush1.msra.mxu0 0.0
    %636 = vmatprep.subr.mxu0 0.0
    %637 = vmatpush1.msra.mxu0 0.0
    %638 = vmatprep.subr.mxu0 0.0
    %639 = vmatpush1.msra.mxu0 0.0
    %640 = vmatprep.subr.mxu0 0.0
    %641 = vmatpush1.msra.mxu0 0.0
    %642 = vmatprep.subr.mxu0 0.0
    %643 = vmatpush1.msra.mxu0 0.0
    %644 = vmatprep.subr.mxu0 0.0
    %645 = vmatpush1.msra.mxu0 0.0
    %646 = vmatprep.subr.mxu0 0.0
    %647 = vmatpush1.msra.mxu0 0.0
    %648 = vmatprep.subr.mxu0 0.0
    %649 = vmatpush1.msra.mxu0 0.0
    %650 = vmatprep.subr.mxu0 0.0
    %651 = vmatpush1.msra.mxu0 0.0
    %652 = vmatprep.subr.mxu0 0.0
    %653 = vmatpush1.msra.mxu0 0.0
    %654 = vmatprep.subr.mxu0 0.0
    %655 = vmatpush1.msra.mxu0 0.0
    %656 = vmatprep.subr.mxu0 0.0
    %657 = vmatpush1.msra.mxu0 0.0
    %658 = vmatprep.subr.mxu0 0.0
    %659 = vmatpush1.msra.mxu0 0.0
    %660 = vmatprep.subr.mxu0 0.0
    %661 = vmatpush1.msra.mxu0 0.0
    %662 = vmatprep.mubr.f32.mxu0 0.0
    %v663 = vand.u32 %v56, 4294901760
    %v664 = vsub.f32 %v56, %v663
    %v665 = vand.u32 %v664, 4294901760
    %666 = vmatmul.mubr.f32.gmra.mrb[0].mxu0 %v665
    %v667 = vpop.f32.mrb[0].mxu0
    %v668 = vadd.f32 %v562, %v667
    %v669 = vpop.f32.mrb[0].mxu0
    %v670 = vadd.f32 %v564, %v669
    %671 = vdwg.mxu0
    %v672 = vand.u32 %v58, 4294901760
    %v673 = vsub.f32 %v58, %v672
    %v674 = vand.u32 %v673, 4294901760
    %675 = vmatprep.subr.mxu0 %v674
    %v676 = vand.u32 %v57, 4294901760
    %v677 = vsub.f32 %v57, %v676
    %v678 = vand.u32 %v677, 4294901760
    %679 = vmatpush1.msra.mxu0 %v678
    %v680 = vand.u32 %v60, 4294901760
    %v681 = vsub.f32 %v60, %v680
    %v682 = vand.u32 %v681, 4294901760
    %683 = vmatprep.subr.mxu0 %v682
    %v684 = vand.u32 %v59, 4294901760
    %v685 = vsub.f32 %v59, %v684
    %v686 = vand.u32 %v685, 4294901760
    %687 = vmatpush1.msra.mxu0 %v686
    %v688 = vand.u32 %v62, 4294901760
    %v689 = vsub.f32 %v62, %v688
    %v690 = vand.u32 %v689, 4294901760
    %691 = vmatprep.subr.mxu0 %v690
    %v692 = vand.u32 %v61, 4294901760
    %v693 = vsub.f32 %v61, %v692
    %v694 = vand.u32 %v693, 4294901760
    %695 = vmatpush1.msra.mxu0 %v694
    %v696 = vand.u32 %v64, 4294901760
    %v697 = vsub.f32 %v64, %v696
    %v698 = vand.u32 %v697, 4294901760
    %699 = vmatprep.subr.mxu0 %v698
    %v700 = vand.u32 %v63, 4294901760
    %v701 = vsub.f32 %v63, %v700
    %v702 = vand.u32 %v701, 4294901760
    %703 = vmatpush1.msra.mxu0 %v702
    %v704 = vand.u32 %v66, 4294901760
    %v705 = vsub.f32 %v66, %v704
    %v706 = vand.u32 %v705, 4294901760
    %707 = vmatprep.subr.mxu0 %v706
    %v708 = vand.u32 %v65, 4294901760
    %v709 = vsub.f32 %v65, %v708
    %v710 = vand.u32 %v709, 4294901760
    %711 = vmatpush1.msra.mxu0 %v710
    %v712 = vand.u32 %v68, 4294901760
    %v713 = vsub.f32 %v68, %v712
    %v714 = vand.u32 %v713, 4294901760
    %715 = vmatprep.subr.mxu0 %v714
    %v716 = vand.u32 %v67, 4294901760
    %v717 = vsub.f32 %v67, %v716
    %v718 = vand.u32 %v717, 4294901760
    %719 = vmatpush1.msra.mxu0 %v718
    %v720 = vand.u32 %v70, 4294901760
    %v721 = vsub.f32 %v70, %v720
    %v722 = vand.u32 %v721, 4294901760
    %723 = vmatprep.subr.mxu0 %v722
    %v724 = vand.u32 %v69, 4294901760
    %v725 = vsub.f32 %v69, %v724
    %v726 = vand.u32 %v725, 4294901760
    %727 = vmatpush1.msra.mxu0 %v726
    %v728 = vand.u32 %v72, 4294901760
    %v729 = vsub.f32 %v72, %v728
    %v730 = vand.u32 %v729, 4294901760
    %731 = vmatprep.subr.mxu0 %v730
    %v732 = vand.u32 %v71, 4294901760
    %v733 = vsub.f32 %v71, %v732
    %v734 = vand.u32 %v733, 4294901760
    %735 = vmatpush1.msra.mxu0 %v734
    %v736 = vand.u32 %v74, 4294901760
    %v737 = vsub.f32 %v74, %v736
    %v738 = vand.u32 %v737, 4294901760
    %739 = vmatprep.subr.mxu0 %v738
    %v740 = vand.u32 %v73, 4294901760
    %v741 = vsub.f32 %v73, %v740
    %v742 = vand.u32 %v741, 4294901760
    %743 = vmatpush1.msra.mxu0 %v742
    %v744 = vand.u32 %v76, 4294901760
    %v745 = vsub.f32 %v76, %v744
    %v746 = vand.u32 %v745, 4294901760
    %747 = vmatprep.subr.mxu0 %v746
    %v748 = vand.u32 %v75, 4294901760
    %v749 = vsub.f32 %v75, %v748
    %v750 = vand.u32 %v749, 4294901760
    %751 = vmatpush1.msra.mxu0 %v750
    %v752 = vand.u32 %v78, 4294901760
    %v753 = vsub.f32 %v78, %v752
    %v754 = vand.u32 %v753, 4294901760
    %755 = vmatprep.subr.mxu0 %v754
    %v756 = vand.u32 %v77, 4294901760
    %v757 = vsub.f32 %v77, %v756
    %v758 = vand.u32 %v757, 4294901760
    %759 = vmatpush1.msra.mxu0 %v758
    %v760 = vand.u32 %v80, 4294901760
    %v761 = vsub.f32 %v80, %v760
    %v762 = vand.u32 %v761, 4294901760
    %763 = vmatprep.subr.mxu0 %v762
    %v764 = vand.u32 %v79, 4294901760
    %v765 = vsub.f32 %v79, %v764
    %v766 = vand.u32 %v765, 4294901760
    %767 = vmatpush1.msra.mxu0 %v766
    %v768 = vand.u32 %v82, 4294901760
    %v769 = vsub.f32 %v82, %v768
    %v770 = vand.u32 %v769, 4294901760
    %771 = vmatprep.subr.mxu0 %v770
    %v772 = vand.u32 %v81, 4294901760
    %v773 = vsub.f32 %v81, %v772
    %v774 = vand.u32 %v773, 4294901760
    %775 = vmatpush1.msra.mxu0 %v774
    %v776 = vand.u32 %v84, 4294901760
    %v777 = vsub.f32 %v84, %v776
    %v778 = vand.u32 %v777, 4294901760
    %779 = vmatprep.subr.mxu0 %v778
    %v780 = vand.u32 %v83, 4294901760
    %v781 = vsub.f32 %v83, %v780
    %v782 = vand.u32 %v781, 4294901760
    %783 = vmatpush1.msra.mxu0 %v782
    %v784 = vand.u32 %v86, 4294901760
    %v785 = vsub.f32 %v86, %v784
    %v786 = vand.u32 %v785, 4294901760
    %787 = vmatprep.subr.mxu0 %v786
    %v788 = vand.u32 %v85, 4294901760
    %v789 = vsub.f32 %v85, %v788
    %v790 = vand.u32 %v789, 4294901760
    %791 = vmatpush1.msra.mxu0 %v790
    %v792 = vand.u32 %v88, 4294901760
    %v793 = vsub.f32 %v88, %v792
    %v794 = vand.u32 %v793, 4294901760
    %795 = vmatprep.subr.mxu0 %v794
    %v796 = vand.u32 %v87, 4294901760
    %v797 = vsub.f32 %v87, %v796
    %v798 = vand.u32 %v797, 4294901760
    %799 = vmatpush1.msra.mxu0 %v798
    %800 = vmatprep.subr.mxu0 0.0
    %801 = vmatpush1.msra.mxu0 0.0
    %802 = vmatprep.subr.mxu0 0.0
    %803 = vmatpush1.msra.mxu0 0.0
    %804 = vmatprep.subr.mxu0 0.0
    %805 = vmatpush1.msra.mxu0 0.0
    %806 = vmatprep.subr.mxu0 0.0
    %807 = vmatpush1.msra.mxu0 0.0
    %808 = vmatprep.subr.mxu0 0.0
    %809 = vmatpush1.msra.mxu0 0.0
    %810 = vmatprep.subr.mxu0 0.0
    %811 = vmatpush1.msra.mxu0 0.0
    %812 = vmatprep.subr.mxu0 0.0
    %813 = vmatpush1.msra.mxu0 0.0
    %814 = vmatprep.subr.mxu0 0.0
    %815 = vmatpush1.msra.mxu0 0.0
    %816 = vmatprep.subr.mxu0 0.0
    %817 = vmatpush1.msra.mxu0 0.0
    %818 = vmatprep.subr.mxu0 0.0
    %819 = vmatpush1.msra.mxu0 0.0
    %820 = vmatprep.subr.mxu0 0.0
    %821 = vmatpush1.msra.mxu0 0.0
    %822 = vmatprep.subr.mxu0 0.0
    %823 = vmatpush1.msra.mxu0 0.0
    %824 = vmatprep.subr.mxu0 0.0
    %825 = vmatpush1.msra.mxu0 0.0
    %826 = vmatprep.subr.mxu0 0.0
    %827 = vmatpush1.msra.mxu0 0.0
    %828 = vmatprep.subr.mxu0 0.0
    %829 = vmatpush1.msra.mxu0 0.0
    %830 = vmatprep.subr.mxu0 0.0
    %831 = vmatpush1.msra.mxu0 0.0
    %832 = vmatprep.mubr.f32.mxu0 0.0
    %v833 = vand.u32 %v56, 4294901760
    %834 = vmatmul.mubr.f32.gmra.mrb[0].mxu0 %v833
    %v835 = vpop.f32.mrb[0].mxu0
    %v836 = vadd.f32 %v668, %v835
    %v837 = vpop.f32.mrb[0].mxu0
    %v838 = vadd.f32 %v670, %v837
    %839 = vdwg.mxu0
    %v840 = vand.u32 %v58, 4294901760
    %841 = vmatprep.subr.mxu0 %v840
    %v842 = vand.u32 %v57, 4294901760
    %843 = vmatpush1.msra.mxu0 %v842
    %v844 = vand.u32 %v60, 4294901760
    %845 = vmatprep.subr.mxu0 %v844
    %v846 = vand.u32 %v59, 4294901760
    %847 = vmatpush1.msra.mxu0 %v846
    %v848 = vand.u32 %v62, 4294901760
    %849 = vmatprep.subr.mxu0 %v848
    %v850 = vand.u32 %v61, 4294901760
    %851 = vmatpush1.msra.mxu0 %v850
    %v852 = vand.u32 %v64, 4294901760
    %853 = vmatprep.subr.mxu0 %v852
    %v854 = vand.u32 %v63, 4294901760
    %855 = vmatpush1.msra.mxu0 %v854
    %v856 = vand.u32 %v66, 4294901760
    %857 = vmatprep.subr.mxu0 %v856
    %v858 = vand.u32 %v65, 4294901760
    %859 = vmatpush1.msra.mxu0 %v858
    %v860 = vand.u32 %v68, 4294901760
    %861 = vmatprep.subr.mxu0 %v860
    %v862 = vand.u32 %v67, 4294901760
    %863 = vmatpush1.msra.mxu0 %v862
    %v864 = vand.u32 %v70, 4294901760
    %865 = vmatprep.subr.mxu0 %v864
    %v866 = vand.u32 %v69, 4294901760
    %867 = vmatpush1.msra.mxu0 %v866
    %v868 = vand.u32 %v72, 4294901760
    %869 = vmatprep.subr.mxu0 %v868
    %v870 = vand.u32 %v71, 4294901760
    %871 = vmatpush1.msra.mxu0 %v870
    %v872 = vand.u32 %v74, 4294901760
    %873 = vmatprep.subr.mxu0 %v872
    %v874 = vand.u32 %v73, 4294901760
    %875 = vmatpush1.msra.mxu0 %v874
    %v876 = vand.u32 %v76, 4294901760
    %877 = vmatprep.subr.mxu0 %v876
    %v878 = vand.u32 %v75, 4294901760
    %879 = vmatpush1.msra.mxu0 %v878
    %v880 = vand.u32 %v78, 4294901760
    %881 = vmatprep.subr.mxu0 %v880
    %v882 = vand.u32 %v77, 4294901760
    %883 = vmatpush1.msra.mxu0 %v882
    %v884 = vand.u32 %v80, 4294901760
    %885 = vmatprep.subr.mxu0 %v884
    %v886 = vand.u32 %v79, 4294901760
    %887 = vmatpush1.msra.mxu0 %v886
    %v888 = vand.u32 %v82, 4294901760
    %889 = vmatprep.subr.mxu0 %v888
    %v890 = vand.u32 %v81, 4294901760
    %891 = vmatpush1.msra.mxu0 %v890
    %v892 = vand.u32 %v84, 4294901760
    %893 = vmatprep.subr.mxu0 %v892
    %v894 = vand.u32 %v83, 4294901760
    %895 = vmatpush1.msra.mxu0 %v894
    %v896 = vand.u32 %v86, 4294901760
    %897 = vmatprep.subr.mxu0 %v896
    %v898 = vand.u32 %v85, 4294901760
    %899 = vmatpush1.msra.mxu0 %v898
    %v900 = vand.u32 %v88, 4294901760
    %901 = vmatprep.subr.mxu0 %v900
    %v902 = vand.u32 %v87, 4294901760
    %903 = vmatpush1.msra.mxu0 %v902
    %904 = vmatprep.subr.mxu0 0.0
    %905 = vmatpush1.msra.mxu0 0.0
    %906 = vmatprep.subr.mxu0 0.0
    %907 = vmatpush1.msra.mxu0 0.0
    %908 = vmatprep.subr.mxu0 0.0
    %909 = vmatpush1.msra.mxu0 0.0
    %910 = vmatprep.subr.mxu0 0.0
    %911 = vmatpush1.msra.mxu0 0.0
    %912 = vmatprep.subr.mxu0 0.0
    %913 = vmatpush1.msra.mxu0 0.0
    %914 = vmatprep.subr.mxu0 0.0
    %915 = vmatpush1.msra.mxu0 0.0
    %916 = vmatprep.subr.mxu0 0.0
    %917 = vmatpush1.msra.mxu0 0.0
    %918 = vmatprep.subr.mxu0 0.0
    %919 = vmatpush1.msra.mxu0 0.0
    %920 = vmatprep.subr.mxu0 0.0
    %921 = vmatpush1.msra.mxu0 0.0
    %922 = vmatprep.subr.mxu0 0.0
    %923 = vmatpush1.msra.mxu0 0.0
    %924 = vmatprep.subr.mxu0 0.0
    %925 = vmatpush1.msra.mxu0 0.0
    %926 = vmatprep.subr.mxu0 0.0
    %927 = vmatpush1.msra.mxu0 0.0
    %928 = vmatprep.subr.mxu0 0.0
    %929 = vmatpush1.msra.mxu0 0.0
    %930 = vmatprep.subr.mxu0 0.0
    %931 = vmatpush1.msra.mxu0 0.0
    %932 = vmatprep.subr.mxu0 0.0
    %933 = vmatpush1.msra.mxu0 0.0
    %934 = vmatprep.subr.mxu0 0.0
    %935 = vmatpush1.msra.mxu0 0.0
    %936 = vmatprep.mubr.f32.mxu0 0.0
    %v937 = vand.u32 %v56, 4294901760
    %938 = vmatmul.mubr.f32.gmra.mrb[0].mxu0 %v937
    %v939 = vpop.f32.mrb[0].mxu0
    %v940 = vadd.f32 %v836, %v939
    %v941 = vpop.f32.mrb[0].mxu0
    %v942 = vadd.f32 %v838, %v941
    %943 = vdwg.mxu0
    %944 = vst [vmem:[#allocation5] sm:$0xff] %v940
    %945 = vst [vmem:[#allocation5 + $0x8] sm:$0xff] %v942
    // Predicated region
    $region14: #{tpu_custom_call.1} parent=1 // pred_check
      _
    $region15: #{tpu_custom_call.1} parent=1 // pred_check_branch
      %947 = sbr.rel (0) target = $region17
    $region16: #{tpu_custom_call.1} parent=1 // pred_region
      %s949 = ssub.s32 256, 256
      %950 = vsyncadd [#allocation4], %s949
      %s952 = sshll.u32 [#allocation5], 4
      %s953 = int_to_ptr.vmem [resolvable:$true] %s952
      %955 = dma.vmem_to_hbm [thread:$0]  %s953, 256, %s2, [#allocation4]
    $region17: #{tpu_custom_call.1} parent=1 // pred_fallthru
      _
    // Predicated region
    $region18: #{tpu_custom_call.1} parent=1 // pred_check
      _
    $region19: #{tpu_custom_call.1} parent=1 // pred_check_branch
      %957 = sbr.rel (0) target = $region21
    $region20: #{tpu_custom_call.1} parent=1 // pred_region
      %958 = dma.done [#allocation4], 256
    $region21: #{tpu_custom_call.1} parent=1 // pred_fallthru
      _
    %959 = vsyncpa [#allocation3], 1
    %960 = vsyncpa [#allocation4], 1

</llo_original>
